<compile_context>
chip_gen: v6e
topology: v6e:2x2x1
jax: 0.10.0
libtpu: 0.0.40
codegen_flags: <defaults>
</compile_context>

<pallas_src>
import functools

import jax
import jax.numpy as jnp
import numpy as np
from jax.experimental import pallas as pl
from jax.experimental.pallas import tpu as pltpu

BN_EPS = 1e-5  # nn.BatchNorm2d default


# ----------------------------- Pallas kernel ---------------------------------
def _meem_kernel(x_ref, pool_ref, w_in_ref, b_in_ref, w_mid_ref, b_mid_ref,
                 w_ee_ref, b_ee_ref, w_out_ref, b_out_ref, o_ref, parts_ref,
                 *, img_w, width, hidden, pool_is_matrix):
    n = x_ref.shape[-1]  # H*W (lane axis), one image per grid step

    if pool_is_matrix:
        # Un-normalized 3x3 zero-padded neighborhood sum as an MXU matmul:
        # pool_ref is the banded (n, n) indicator matrix (boundary masks baked in).
        def poolsum(v):
            return jnp.dot(v, pool_ref[...], preferred_element_type=jnp.float32)
    else:
        # Roll + mask separable pool.  Boundary masks are pre-broadcast to (hidden, n)
        # ONCE here (hoisted out of the width loop; JAX does not CSE broadcast_in_dim).
        m_l = jnp.broadcast_to(pool_ref[0:1, :], (hidden, n))
        m_r = jnp.broadcast_to(pool_ref[1:2, :], (hidden, n))
        m_u = jnp.broadcast_to(pool_ref[2:3, :], (hidden, n))
        m_d = jnp.broadcast_to(pool_ref[3:4, :], (hidden, n))

        def poolsum(v):
            hs = v + m_l * pltpu.roll(v, 1, axis=1) + m_r * pltpu.roll(v, n - 1, axis=1)
            return (hs + m_u * pltpu.roll(hs, img_w, axis=1)
                    + m_d * pltpu.roll(hs, n - img_w, axis=1))

    def conv(w, b, v):
        # 1x1 conv with BN (and any static scales) pre-folded into (w, b).
        return jnp.dot(w, v, preferred_element_type=jnp.float32) + b

    def half_sigmoid(y):
        # sigmoid(2y) = 0.5*tanh(y)+0.5 ; the inner 0.5 is folded into the conv weights.
        # tanh lands on the EUP slot instead of a VPU Newton-Raphson divide.
        return 0.5 * jnp.tanh(y) + 0.5

    x = x_ref[...]                                                     # (Cin, n)
    mid = half_sigmoid(conv(w_in_ref[...], b_in_ref[...], x))          # (hidden, n)
    parts_ref[0:hidden, :] = mid

    for i in range(width - 1):
        # mid conv: 1/9 of the avg-pool is folded into w_mid -> feed the raw pool sum.
        mid = half_sigmoid(conv(w_mid_ref[i], b_mid_ref[i], poolsum(mid)))
        # EdgeEnhancer: mid + sigmoid(conv(mid - avgpool(mid)))
        edge = mid - poolsum(mid) * (1.0 / 9.0)
        edge = half_sigmoid(conv(w_ee_ref[i], b_ee_ref[i], edge))
        parts_ref[(i + 1) * hidden:(i + 2) * hidden, :] = mid + edge

    out = conv(w_out_ref[...], b_out_ref[...], parts_ref[...])         # (Cin, n)
    o_ref[...] = jnp.maximum(out, 0.0).astype(o_ref.dtype)             # ReLU


# ----------------------------- Wrapper ----------------------------------------
def _fold_bn(w, bn):
    """Fold eval-mode BatchNorm into a bias-free 1x1 conv weight (Cout, Cin)."""
    gamma, beta, mean, var = bn
    scale = gamma / jnp.sqrt(var + BN_EPS)
    return w * scale[:, None], (beta - mean * scale)[:, None]


def _prep_weights(params):
    # Fold BN into every 1x1 conv; additionally fold:
    #   * 0.5 into all sigmoid-conv weights/biases (sigmoid = 0.5*tanh(0.5*y)+0.5),
    #   * 1/9 of the avg-pool into the mid-conv weights (pool sum is fed un-normalized).
    w_in, b_in = _fold_bn(params['w_in'], params['bn_in'])
    w_in, b_in = 0.5 * w_in, 0.5 * b_in

    mids = [_fold_bn(w, bn) for w, bn in zip(params['w_mid'], params['bn_mid'])]
    ees = [_fold_bn(w, bn) for w, bn in zip(params['w_ee'], params['bn_ee'])]
    w_mid = jnp.stack([(0.5 / 9.0) * w for w, _ in mids])   # (width-1, hidden, hidden)
    b_mid = jnp.stack([0.5 * b for _, b in mids])            # (width-1, hidden, 1)
    w_ee = jnp.stack([0.5 * w for w, _ in ees])
    b_ee = jnp.stack([0.5 * b for _, b in ees])

    w_out, b_out = _fold_bn(params['w_out'], params['bn_out'])  # ReLU: no extra scale
    return w_in, b_in, w_mid, b_mid, w_ee, b_ee, w_out, b_out


def meem_pallas(x_nchw, params, *, pool_matrix_max_pixels=2048, force_roll_pool=False):
    B, c_in, H, W = x_nchw.shape
    width = len(params['w_mid']) + 1
    hidden = params['w_in'].shape[0]
    n = H * W

    w_in, b_in, w_mid, b_mid, w_ee, b_ee, w_out, b_out = _prep_weights(params)

    pos = jnp.arange(n, dtype=jnp.int32)
    row = pos // W
    col = pos % W
    use_matrix = (not force_roll_pool) and (n <= pool_matrix_max_pixels)
    if use_matrix:
        # Banded (n, n) indicator: q contributes to p iff q is in p's 3x3 neighborhood.
        pool_arr = ((jnp.abs(row[:, None] - row[None, :]) <= 1)
                    & (jnp.abs(col[:, None] - col[None, :]) <= 1)).astype(jnp.float32)
    else:
        # Neighbor-validity masks (left / right / up / down) for the roll-based pool.
        pool_arr = jnp.stack([col >= 1, col <= W - 2,
                              row >= 1, row <= H - 2]).astype(jnp.float32)

    # Pure reshape (no transpose, no HBM relayout): (B, C, H, W) -> (B, C, H*W).
    x3 = x_nchw.reshape(B, c_in, n)

    kernel = functools.partial(_meem_kernel, img_w=W, width=width, hidden=hidden,
                               pool_is_matrix=use_matrix)

    def _const_spec(shape):
        # Full-array block with a constant index map -> stays resident across the grid.
        return pl.BlockSpec(shape, lambda b, _nd=len(shape): (0,) * _nd)

    in_specs = [
        pl.BlockSpec((None, c_in, n), lambda b: (b, 0, 0)),   # x: one image per step
        _const_spec(pool_arr.shape),
        _const_spec(w_in.shape), _const_spec(b_in.shape),
        _const_spec(w_mid.shape), _const_spec(b_mid.shape),
        _const_spec(w_ee.shape), _const_spec(b_ee.shape),
        _const_spec(w_out.shape), _const_spec(b_out.shape),
    ]

    out3 = pl.pallas_call(
        kernel,
        grid=(B,),
        out_shape=jax.ShapeDtypeStruct((B, c_in, n), x_nchw.dtype),
        in_specs=in_specs,
        out_specs=pl.BlockSpec((None, c_in, n), lambda b: (b, 0, 0)),
        scratch_shapes=[pltpu.VMEM((hidden * width, n), jnp.float32)],
        compiler_params=pltpu.CompilerParams(
            dimension_semantics=("parallel",),
            vmem_limit_bytes=32 * 1024 * 1024),
    )(x3, pool_arr, w_in, b_in, w_mid, b_mid, w_ee, b_ee, w_out, b_out)

    return out3.reshape(B, c_in, H, W)


# ----------------------------- Pure-JAX reference (unfolded, NCHW) -------------
def _bn_eval(y, bn):
    gamma, beta, mean, var = bn
    scale = gamma / jnp.sqrt(var + BN_EPS)
    shift = beta - mean * scale
    return y * scale[None, :, None, None] + shift[None, :, None, None]


def _conv1x1(x, w):  # x: (B,Cin,H,W), w: (Cout,Cin)
    return jnp.einsum('bchw,oc->bohw', x, w)


def _avgpool3_ref(x):  # AvgPool2d(3, stride=1, padding=1), count_include_pad=True
    H, W = x.shape[2], x.shape[3]
    xp = jnp.pad(x, ((0, 0), (0, 0), (1, 1), (1, 1)))
    s = jnp.zeros_like(x)
    for dy in range(3):
        for dx in range(3):
            s = s + xp[:, :, dy:dy + H, dx:dx + W]
    return s / 9.0


def meem_ref(x, params):
    width = len(params['w_mid']) + 1
    mid = jax.nn.sigmoid(_bn_eval(_conv1x1(x, params['w_in']), params['bn_in']))
    out = mid
    for i in range(width - 1):
        mid = _avgpool3_ref(mid)
        mid = jax.nn.sigmoid(_bn_eval(_conv1x1(mid, params['w_mid'][i]), params['bn_mid'][i]))
        edge = _avgpool3_ref(mid)
        edge = mid - edge
        edge = jax.nn.sigmoid(_bn_eval(_conv1x1(edge, params['w_ee'][i]), params['bn_ee'][i]))
        out = jnp.concatenate([out, mid + edge], axis=1)
    return jax.nn.relu(_bn_eval(_conv1x1(out, params['w_out']), params['bn_out']))


# ----------------------------- main --------------------------------------------
if __name__ == "__main__":
    B, c_in, H, W = 2, 4, 16, 16
    hidden, width = 16, 4

    key = jax.random.PRNGKey(0)
    ks = list(jax.random.split(key, 17))

    def bn_params(k, c):
        k1, k2, k3, k4 = jax.random.split(k, 4)
        gamma = 1.0 + 0.1 * jax.random.normal(k1, (c,), jnp.float32)
        beta = 0.1 * jax.random.normal(k2, (c,), jnp.float32)
        mean = 0.1 * jax.random.normal(k3, (c,), jnp.float32)
        var = jax.random.uniform(k4, (c,), jnp.float32, 0.5, 1.5)
        return (gamma, beta, mean, var)

    x = jax.random.normal(ks[0], (B, c_in, H, W), dtype=jnp.float32)

    params = {
        'w_in': 0.5 * jax.random.normal(ks[1], (hidden, c_in), jnp.float32),
        'bn_in': bn_params(ks[2], hidden),
        'w_mid': [0.5 * jax.random.normal(ks[3 + 2 * i], (hidden, hidden), jnp.float32)
                  for i in range(width - 1)],
        'bn_mid': [bn_params(ks[4 + 2 * i], hidden) for i in range(width - 1)],
        'w_ee': [0.5 * jax.random.normal(ks[9 + 2 * i], (hidden, hidden), jnp.float32)
                 for i in range(width - 1)],
        'bn_ee': [bn_params(ks[10 + 2 * i], hidden) for i in range(width - 1)],
        'w_out': 0.5 * jax.random.normal(ks[15], (c_in, hidden * width), jnp.float32),
        'bn_out': bn_params(ks[16], c_in),
    }

    ref = jax.block_until_ready(meem_ref(x, params))

    # Default path: pooling as an MXU matmul against the banded indicator matrix.
    out_mx = jax.block_until_ready(meem_pallas(x, params))
    np.testing.assert_allclose(np.asarray(out_mx), np.asarray(ref), rtol=2e-3, atol=2e-3)

    # Fallback path (large images): roll + hoisted-mask separable pool.
    out_roll = jax.block_until_ready(meem_pallas(x, params, force_roll_pool=True))
    np.testing.assert_allclose(np.asarray(out_roll), np.asarray(ref), rtol=2e-3, atol=2e-3)

    print("KERNEL_OK")
</pallas_src>

<mosaic_0001>
module attributes {stable_mosaic.version = 11 : i64} {
  func.func @_meem_kernel(%arg0: i32, %arg1: memref<1x4x256xf32, #tpu.memory_space<vmem>>, %arg2: memref<256x256xf32, #tpu.memory_space<vmem>>, %arg3: memref<16x4xf32, #tpu.memory_space<vmem>>, %arg4: memref<16x1xf32, #tpu.memory_space<vmem>>, %arg5: memref<3x16x16xf32, #tpu.memory_space<vmem>>, %arg6: memref<3x16x1xf32, #tpu.memory_space<vmem>>, %arg7: memref<3x16x16xf32, #tpu.memory_space<vmem>>, %arg8: memref<3x16x1xf32, #tpu.memory_space<vmem>>, %arg9: memref<4x64xf32, #tpu.memory_space<vmem>>, %arg10: memref<4x1xf32, #tpu.memory_space<vmem>>, %arg11: memref<1x4x256xf32, #tpu.memory_space<vmem>>, %arg12: memref<64x256xf32, #tpu.memory_space<vmem>>) attributes {dimension_semantics = [#tpu.dimension_semantics<parallel>], iteration_bounds = array<i64: 2>, scalar_prefetch = 0 : i64, scratch_operands = 1 : i64, tpu.core_type = #tpu.core_type<tc>, window_params = [{transform_indices = @transform_0, window_bounds = array<i64: 1, 4, 256>}, {pipeline_mode = #tpu.pipeline_mode<synchronous>, transform_indices = @transform_1, window_bounds = array<i64: 256, 256>}, {pipeline_mode = #tpu.pipeline_mode<synchronous>, transform_indices = @transform_2, window_bounds = array<i64: 16, 4>}, {pipeline_mode = #tpu.pipeline_mode<synchronous>, transform_indices = @transform_3, window_bounds = array<i64: 16, 1>}, {pipeline_mode = #tpu.pipeline_mode<synchronous>, transform_indices = @transform_4, window_bounds = array<i64: 3, 16, 16>}, {pipeline_mode = #tpu.pipeline_mode<synchronous>, transform_indices = @transform_5, window_bounds = array<i64: 3, 16, 1>}, {pipeline_mode = #tpu.pipeline_mode<synchronous>, transform_indices = @transform_6, window_bounds = array<i64: 3, 16, 16>}, {pipeline_mode = #tpu.pipeline_mode<synchronous>, transform_indices = @transform_7, window_bounds = array<i64: 3, 16, 1>}, {pipeline_mode = #tpu.pipeline_mode<synchronous>, transform_indices = @transform_8, window_bounds = array<i64: 4, 64>}, {pipeline_mode = #tpu.pipeline_mode<synchronous>, transform_indices = @transform_9, window_bounds = array<i64: 4, 1>}, {transform_indices = @transform_10, window_bounds = array<i64: 1, 4, 256>}]} {
    %c0 = arith.constant 0 : index
    %c0_0 = arith.constant 0 : index
    %c0_1 = arith.constant 0 : index
    %0 = vector.load %arg1[%c0, %c0_0, %c0_1] : memref<1x4x256xf32, #tpu.memory_space<vmem>>, vector<1x4x256xf32>
    %1 = vector.shape_cast %0 : vector<1x4x256xf32> to vector<4x256xf32>
    %c0_2 = arith.constant 0 : index
    %c0_3 = arith.constant 0 : index
    %2 = vector.load %arg3[%c0_2, %c0_3] : memref<16x4xf32, #tpu.memory_space<vmem>>, vector<16x4xf32>
    %c0_4 = arith.constant 0 : index
    %c0_5 = arith.constant 0 : index
    %3 = vector.load %arg4[%c0_4, %c0_5] : memref<16x1xf32, #tpu.memory_space<vmem>>, vector<16x1xf32>
    %cst = arith.constant dense<0.000000e+00> : vector<16x256xf32>
    %4 = tpu.matmul %2, %1, %cst {dimension_numbers = #tpu.dot_dimension_numbers<[1], [0], [0], [1], [0, 0, 1, 1], [], []>} : vector<16x4xf32>, vector<4x256xf32>, vector<16x256xf32> -> vector<16x256xf32>
    %5 = vector.broadcast %3 : vector<16x1xf32> to vector<16x256xf32>
    %6 = arith.addf %4, %5 : vector<16x256xf32>
    %7 = math.tanh %6 : vector<16x256xf32>
    %cst_6 = arith.constant 5.000000e-01 : f32
    %8 = vector.broadcast %cst_6 : f32 to vector<16x256xf32>
    %9 = arith.mulf %8, %7 : vector<16x256xf32>
    %cst_7 = arith.constant 5.000000e-01 : f32
    %10 = vector.broadcast %cst_7 : f32 to vector<16x256xf32>
    %11 = arith.addf %9, %10 : vector<16x256xf32>
    %c0_8 = arith.constant 0 : index
    %c0_9 = arith.constant 0 : index
    %12 = vector.load %arg12[%c0_8, %c0_9] : memref<64x256xf32, #tpu.memory_space<vmem>>, vector<16x256xf32>
    tpu.vector_store %arg12[%c0_8, %c0_9], %11 {strides = array<i32>} : memref<64x256xf32, #tpu.memory_space<vmem>>, vector<16x256xf32>,
    %c0_10 = arith.constant 0 : index
    %c0_11 = arith.constant 0 : index
    %c0_12 = arith.constant 0 : index
    %13 = vector.load %arg5[%c0_10, %c0_11, %c0_12] : memref<3x16x16xf32, #tpu.memory_space<vmem>>, vector<1x16x16xf32>
    %14 = vector.shape_cast %13 : vector<1x16x16xf32> to vector<16x16xf32>
    %c0_13 = arith.constant 0 : index
    %c0_14 = arith.constant 0 : index
    %c0_15 = arith.constant 0 : index
    %15 = vector.load %arg6[%c0_13, %c0_14, %c0_15] : memref<3x16x1xf32, #tpu.memory_space<vmem>>, vector<1x16x1xf32>
    %16 = vector.shape_cast %15 : vector<1x16x1xf32> to vector<16x1xf32>
    %c0_16 = arith.constant 0 : index
    %c0_17 = arith.constant 0 : index
    %17 = vector.load %arg2[%c0_16, %c0_17] : memref<256x256xf32, #tpu.memory_space<vmem>>, vector<256x256xf32>
    %cst_18 = arith.constant dense<0.000000e+00> : vector<16x256xf32>
    %18 = tpu.matmul %11, %17, %cst_18 {dimension_numbers = #tpu.dot_dimension_numbers<[1], [0], [0], [1], [0, 0, 1, 1], [], []>} : vector<16x256xf32>, vector<256x256xf32>, vector<16x256xf32> -> vector<16x256xf32>
    %cst_19 = arith.constant dense<0.000000e+00> : vector<16x256xf32>
    %19 = tpu.matmul %14, %18, %cst_19 {dimension_numbers = #tpu.dot_dimension_numbers<[1], [0], [0], [1], [0, 0, 1, 1], [], []>} : vector<16x16xf32>, vector<16x256xf32>, vector<16x256xf32> -> vector<16x256xf32>
    %20 = vector.broadcast %16 : vector<16x1xf32> to vector<16x256xf32>
    %21 = arith.addf %19, %20 : vector<16x256xf32>
    %22 = math.tanh %21 : vector<16x256xf32>
    %cst_20 = arith.constant 5.000000e-01 : f32
    %23 = vector.broadcast %cst_20 : f32 to vector<16x256xf32>
    %24 = arith.mulf %23, %22 : vector<16x256xf32>
    %cst_21 = arith.constant 5.000000e-01 : f32
    %25 = vector.broadcast %cst_21 : f32 to vector<16x256xf32>
    %26 = arith.addf %24, %25 : vector<16x256xf32>
    %c0_22 = arith.constant 0 : index
    %c0_23 = arith.constant 0 : index
    %27 = vector.load %arg2[%c0_22, %c0_23] : memref<256x256xf32, #tpu.memory_space<vmem>>, vector<256x256xf32>
    %cst_24 = arith.constant dense<0.000000e+00> : vector<16x256xf32>
    %28 = tpu.matmul %26, %27, %cst_24 {dimension_numbers = #tpu.dot_dimension_numbers<[1], [0], [0], [1], [0, 0, 1, 1], [], []>} : vector<16x256xf32>, vector<256x256xf32>, vector<16x256xf32> -> vector<16x256xf32>
    %cst_25 = arith.constant 0.111111112 : f32
    %29 = vector.broadcast %cst_25 : f32 to vector<16x256xf32>
    %30 = arith.mulf %28, %29 : vector<16x256xf32>
    %31 = arith.subf %26, %30 : vector<16x256xf32>
    %c0_26 = arith.constant 0 : index
    %c0_27 = arith.constant 0 : index
    %c0_28 = arith.constant 0 : index
    %32 = vector.load %arg7[%c0_26, %c0_27, %c0_28] : memref<3x16x16xf32, #tpu.memory_space<vmem>>, vector<1x16x16xf32>
    %33 = vector.shape_cast %32 : vector<1x16x16xf32> to vector<16x16xf32>
    %c0_29 = arith.constant 0 : index
    %c0_30 = arith.constant 0 : index
    %c0_31 = arith.constant 0 : index
    %34 = vector.load %arg8[%c0_29, %c0_30, %c0_31] : memref<3x16x1xf32, #tpu.memory_space<vmem>>, vector<1x16x1xf32>
    %35 = vector.shape_cast %34 : vector<1x16x1xf32> to vector<16x1xf32>
    %cst_32 = arith.constant dense<0.000000e+00> : vector<16x256xf32>
    %36 = tpu.matmul %33, %31, %cst_32 {dimension_numbers = #tpu.dot_dimension_numbers<[1], [0], [0], [1], [0, 0, 1, 1], [], []>} : vector<16x16xf32>, vector<16x256xf32>, vector<16x256xf32> -> vector<16x256xf32>
    %37 = vector.broadcast %35 : vector<16x1xf32> to vector<16x256xf32>
    %38 = arith.addf %36, %37 : vector<16x256xf32>
    %39 = math.tanh %38 : vector<16x256xf32>
    %cst_33 = arith.constant 5.000000e-01 : f32
    %40 = vector.broadcast %cst_33 : f32 to vector<16x256xf32>
    %41 = arith.mulf %40, %39 : vector<16x256xf32>
    %cst_34 = arith.constant 5.000000e-01 : f32
    %42 = vector.broadcast %cst_34 : f32 to vector<16x256xf32>
    %43 = arith.addf %41, %42 : vector<16x256xf32>
    %44 = arith.addf %26, %43 : vector<16x256xf32>
    %c16 = arith.constant 16 : index
    %c0_35 = arith.constant 0 : index
    %45 = vector.load %arg12[%c16, %c0_35] : memref<64x256xf32, #tpu.memory_space<vmem>>, vector<16x256xf32>
    tpu.vector_store %arg12[%c16, %c0_35], %44 {strides = array<i32>} : memref<64x256xf32, #tpu.memory_space<vmem>>, vector<16x256xf32>,
    %c1 = arith.constant 1 : index
    %c0_36 = arith.constant 0 : index
    %c0_37 = arith.constant 0 : index
    %46 = vector.load %arg5[%c1, %c0_36, %c0_37] : memref<3x16x16xf32, #tpu.memory_space<vmem>>, vector<1x16x16xf32>
    %47 = vector.shape_cast %46 : vector<1x16x16xf32> to vector<16x16xf32>
    %c1_38 = arith.constant 1 : index
    %c0_39 = arith.constant 0 : index
    %c0_40 = arith.constant 0 : index
    %48 = vector.load %arg6[%c1_38, %c0_39, %c0_40] : memref<3x16x1xf32, #tpu.memory_space<vmem>>, vector<1x16x1xf32>
    %49 = vector.shape_cast %48 : vector<1x16x1xf32> to vector<16x1xf32>
    %c0_41 = arith.constant 0 : index
    %c0_42 = arith.constant 0 : index
    %50 = vector.load %arg2[%c0_41, %c0_42] : memref<256x256xf32, #tpu.memory_space<vmem>>, vector<256x256xf32>
    %cst_43 = arith.constant dense<0.000000e+00> : vector<16x256xf32>
    %51 = tpu.matmul %26, %50, %cst_43 {dimension_numbers = #tpu.dot_dimension_numbers<[1], [0], [0], [1], [0, 0, 1, 1], [], []>} : vector<16x256xf32>, vector<256x256xf32>, vector<16x256xf32> -> vector<16x256xf32>
    %cst_44 = arith.constant dense<0.000000e+00> : vector<16x256xf32>
    %52 = tpu.matmul %47, %51, %cst_44 {dimension_numbers = #tpu.dot_dimension_numbers<[1], [0], [0], [1], [0, 0, 1, 1], [], []>} : vector<16x16xf32>, vector<16x256xf32>, vector<16x256xf32> -> vector<16x256xf32>
    %53 = vector.broadcast %49 : vector<16x1xf32> to vector<16x256xf32>
    %54 = arith.addf %52, %53 : vector<16x256xf32>
    %55 = math.tanh %54 : vector<16x256xf32>
    %cst_45 = arith.constant 5.000000e-01 : f32
    %56 = vector.broadcast %cst_45 : f32 to vector<16x256xf32>
    %57 = arith.mulf %56, %55 : vector<16x256xf32>
    %cst_46 = arith.constant 5.000000e-01 : f32
    %58 = vector.broadcast %cst_46 : f32 to vector<16x256xf32>
    %59 = arith.addf %57, %58 : vector<16x256xf32>
    %c0_47 = arith.constant 0 : index
    %c0_48 = arith.constant 0 : index
    %60 = vector.load %arg2[%c0_47, %c0_48] : memref<256x256xf32, #tpu.memory_space<vmem>>, vector<256x256xf32>
    %cst_49 = arith.constant dense<0.000000e+00> : vector<16x256xf32>
    %61 = tpu.matmul %59, %60, %cst_49 {dimension_numbers = #tpu.dot_dimension_numbers<[1], [0], [0], [1], [0, 0, 1, 1], [], []>} : vector<16x256xf32>, vector<256x256xf32>, vector<16x256xf32> -> vector<16x256xf32>
    %cst_50 = arith.constant 0.111111112 : f32
    %62 = vector.broadcast %cst_50 : f32 to vector<16x256xf32>
    %63 = arith.mulf %61, %62 : vector<16x256xf32>
    %64 = arith.subf %59, %63 : vector<16x256xf32>
    %c1_51 = arith.constant 1 : index
    %c0_52 = arith.constant 0 : index
    %c0_53 = arith.constant 0 : index
    %65 = vector.load %arg7[%c1_51, %c0_52, %c0_53] : memref<3x16x16xf32, #tpu.memory_space<vmem>>, vector<1x16x16xf32>
    %66 = vector.shape_cast %65 : vector<1x16x16xf32> to vector<16x16xf32>
    %c1_54 = arith.constant 1 : index
    %c0_55 = arith.constant 0 : index
    %c0_56 = arith.constant 0 : index
    %67 = vector.load %arg8[%c1_54, %c0_55, %c0_56] : memref<3x16x1xf32, #tpu.memory_space<vmem>>, vector<1x16x1xf32>
    %68 = vector.shape_cast %67 : vector<1x16x1xf32> to vector<16x1xf32>
    %cst_57 = arith.constant dense<0.000000e+00> : vector<16x256xf32>
    %69 = tpu.matmul %66, %64, %cst_57 {dimension_numbers = #tpu.dot_dimension_numbers<[1], [0], [0], [1], [0, 0, 1, 1], [], []>} : vector<16x16xf32>, vector<16x256xf32>, vector<16x256xf32> -> vector<16x256xf32>
    %70 = vector.broadcast %68 : vector<16x1xf32> to vector<16x256xf32>
    %71 = arith.addf %69, %70 : vector<16x256xf32>
    %72 = math.tanh %71 : vector<16x256xf32>
    %cst_58 = arith.constant 5.000000e-01 : f32
    %73 = vector.broadcast %cst_58 : f32 to vector<16x256xf32>
    %74 = arith.mulf %73, %72 : vector<16x256xf32>
    %cst_59 = arith.constant 5.000000e-01 : f32
    %75 = vector.broadcast %cst_59 : f32 to vector<16x256xf32>
    %76 = arith.addf %74, %75 : vector<16x256xf32>
    %77 = arith.addf %59, %76 : vector<16x256xf32>
    %c32 = arith.constant 32 : index
    %c0_60 = arith.constant 0 : index
    %78 = vector.load %arg12[%c32, %c0_60] : memref<64x256xf32, #tpu.memory_space<vmem>>, vector<16x256xf32>
    tpu.vector_store %arg12[%c32, %c0_60], %77 {strides = array<i32>} : memref<64x256xf32, #tpu.memory_space<vmem>>, vector<16x256xf32>,
    %c2 = arith.constant 2 : index
    %c0_61 = arith.constant 0 : index
    %c0_62 = arith.constant 0 : index
    %79 = vector.load %arg5[%c2, %c0_61, %c0_62] : memref<3x16x16xf32, #tpu.memory_space<vmem>>, vector<1x16x16xf32>
    %80 = vector.shape_cast %79 : vector<1x16x16xf32> to vector<16x16xf32>
    %c2_63 = arith.constant 2 : index
    %c0_64 = arith.constant 0 : index
    %c0_65 = arith.constant 0 : index
    %81 = vector.load %arg6[%c2_63, %c0_64, %c0_65] : memref<3x16x1xf32, #tpu.memory_space<vmem>>, vector<1x16x1xf32>
    %82 = vector.shape_cast %81 : vector<1x16x1xf32> to vector<16x1xf32>
    %c0_66 = arith.constant 0 : index
    %c0_67 = arith.constant 0 : index
    %83 = vector.load %arg2[%c0_66, %c0_67] : memref<256x256xf32, #tpu.memory_space<vmem>>, vector<256x256xf32>
    %cst_68 = arith.constant dense<0.000000e+00> : vector<16x256xf32>
    %84 = tpu.matmul %59, %83, %cst_68 {dimension_numbers = #tpu.dot_dimension_numbers<[1], [0], [0], [1], [0, 0, 1, 1], [], []>} : vector<16x256xf32>, vector<256x256xf32>, vector<16x256xf32> -> vector<16x256xf32>
    %cst_69 = arith.constant dense<0.000000e+00> : vector<16x256xf32>
    %85 = tpu.matmul %80, %84, %cst_69 {dimension_numbers = #tpu.dot_dimension_numbers<[1], [0], [0], [1], [0, 0, 1, 1], [], []>} : vector<16x16xf32>, vector<16x256xf32>, vector<16x256xf32> -> vector<16x256xf32>
    %86 = vector.broadcast %82 : vector<16x1xf32> to vector<16x256xf32>
    %87 = arith.addf %85, %86 : vector<16x256xf32>
    %88 = math.tanh %87 : vector<16x256xf32>
    %cst_70 = arith.constant 5.000000e-01 : f32
    %89 = vector.broadcast %cst_70 : f32 to vector<16x256xf32>
    %90 = arith.mulf %89, %88 : vector<16x256xf32>
    %cst_71 = arith.constant 5.000000e-01 : f32
    %91 = vector.broadcast %cst_71 : f32 to vector<16x256xf32>
    %92 = arith.addf %90, %91 : vector<16x256xf32>
    %c0_72 = arith.constant 0 : index
    %c0_73 = arith.constant 0 : index
    %93 = vector.load %arg2[%c0_72, %c0_73] : memref<256x256xf32, #tpu.memory_space<vmem>>, vector<256x256xf32>
    %cst_74 = arith.constant dense<0.000000e+00> : vector<16x256xf32>
    %94 = tpu.matmul %92, %93, %cst_74 {dimension_numbers = #tpu.dot_dimension_numbers<[1], [0], [0], [1], [0, 0, 1, 1], [], []>} : vector<16x256xf32>, vector<256x256xf32>, vector<16x256xf32> -> vector<16x256xf32>
    %cst_75 = arith.constant 0.111111112 : f32
    %95 = vector.broadcast %cst_75 : f32 to vector<16x256xf32>
    %96 = arith.mulf %94, %95 : vector<16x256xf32>
    %97 = arith.subf %92, %96 : vector<16x256xf32>
    %c2_76 = arith.constant 2 : index
    %c0_77 = arith.constant 0 : index
    %c0_78 = arith.constant 0 : index
    %98 = vector.load %arg7[%c2_76, %c0_77, %c0_78] : memref<3x16x16xf32, #tpu.memory_space<vmem>>, vector<1x16x16xf32>
    %99 = vector.shape_cast %98 : vector<1x16x16xf32> to vector<16x16xf32>
    %c2_79 = arith.constant 2 : index
    %c0_80 = arith.constant 0 : index
    %c0_81 = arith.constant 0 : index
    %100 = vector.load %arg8[%c2_79, %c0_80, %c0_81] : memref<3x16x1xf32, #tpu.memory_space<vmem>>, vector<1x16x1xf32>
    %101 = vector.shape_cast %100 : vector<1x16x1xf32> to vector<16x1xf32>
    %cst_82 = arith.constant dense<0.000000e+00> : vector<16x256xf32>
    %102 = tpu.matmul %99, %97, %cst_82 {dimension_numbers = #tpu.dot_dimension_numbers<[1], [0], [0], [1], [0, 0, 1, 1], [], []>} : vector<16x16xf32>, vector<16x256xf32>, vector<16x256xf32> -> vector<16x256xf32>
    %103 = vector.broadcast %101 : vector<16x1xf32> to vector<16x256xf32>
    %104 = arith.addf %102, %103 : vector<16x256xf32>
    %105 = math.tanh %104 : vector<16x256xf32>
    %cst_83 = arith.constant 5.000000e-01 : f32
    %106 = vector.broadcast %cst_83 : f32 to vector<16x256xf32>
    %107 = arith.mulf %106, %105 : vector<16x256xf32>
    %cst_84 = arith.constant 5.000000e-01 : f32
    %108 = vector.broadcast %cst_84 : f32 to vector<16x256xf32>
    %109 = arith.addf %107, %108 : vector<16x256xf32>
    %110 = arith.addf %92, %109 : vector<16x256xf32>
    %c48 = arith.constant 48 : index
    %c0_85 = arith.constant 0 : index
    %111 = vector.load %arg12[%c48, %c0_85] : memref<64x256xf32, #tpu.memory_space<vmem>>, vector<16x256xf32>
    tpu.vector_store %arg12[%c48, %c0_85], %110 {strides = array<i32>} : memref<64x256xf32, #tpu.memory_space<vmem>>, vector<16x256xf32>,
    %c0_86 = arith.constant 0 : index
    %c0_87 = arith.constant 0 : index
    %112 = vector.load %arg9[%c0_86, %c0_87] : memref<4x64xf32, #tpu.memory_space<vmem>>, vector<4x64xf32>
    %c0_88 = arith.constant 0 : index
    %c0_89 = arith.constant 0 : index
    %113 = vector.load %arg10[%c0_88, %c0_89] : memref<4x1xf32, #tpu.memory_space<vmem>>, vector<4x1xf32>
    %c0_90 = arith.constant 0 : index
    %c0_91 = arith.constant 0 : index
    %114 = vector.load %arg12[%c0_90, %c0_91] : memref<64x256xf32, #tpu.memory_space<vmem>>, vector<64x256xf32>
    %cst_92 = arith.constant dense<0.000000e+00> : vector<4x256xf32>
    %115 = tpu.matmul %112, %114, %cst_92 {dimension_numbers = #tpu.dot_dimension_numbers<[1], [0], [0], [1], [0, 0, 1, 1], [], []>} : vector<4x64xf32>, vector<64x256xf32>, vector<4x256xf32> -> vector<4x256xf32>
    %116 = vector.broadcast %113 : vector<4x1xf32> to vector<4x256xf32>
    %117 = arith.addf %115, %116 : vector<4x256xf32>
    %cst_93 = arith.constant 0.000000e+00 : f32
    %118 = vector.broadcast %cst_93 : f32 to vector<4x256xf32>
    %119 = arith.maximumf %117, %118 : vector<4x256xf32>
    %c0_94 = arith.constant 0 : index
    %c0_95 = arith.constant 0 : index
    %c0_96 = arith.constant 0 : index
    %120 = vector.load %arg11[%c0_94, %c0_95, %c0_96] : memref<1x4x256xf32, #tpu.memory_space<vmem>>, vector<1x4x256xf32>
    %121 = vector.shape_cast %120 : vector<1x4x256xf32> to vector<4x256xf32>
    %122 = vector.shape_cast %119 : vector<4x256xf32> to vector<1x4x256xf32>
    tpu.vector_store %arg11[%c0_94, %c0_95, %c0_96], %122 {strides = array<i32>} : memref<1x4x256xf32, #tpu.memory_space<vmem>>, vector<1x4x256xf32>,
    return
  }
  func.func @transform_0(%arg0: i32) -> (i32, i32, i32) {
    %c0_i32 = arith.constant 0 : i32
    %c0_i32_0 = arith.constant 0 : i32
    %c0_i32_1 = arith.constant 0 : i32
    return %arg0, %c0_i32, %c0_i32_0 : i32, i32, i32
  }
  func.func @transform_1(%arg0: i32) -> (i32, i32) {
    %c0_i32 = arith.constant 0 : i32
    %c0_i32_0 = arith.constant 0 : i32
    %c0_i32_1 = arith.constant 0 : i32
    return %c0_i32, %c0_i32_0 : i32, i32
  }
  func.func @transform_2(%arg0: i32) -> (i32, i32) {
    %c0_i32 = arith.constant 0 : i32
    %c0_i32_0 = arith.constant 0 : i32
    %c0_i32_1 = arith.constant 0 : i32
    return %c0_i32, %c0_i32_0 : i32, i32
  }
  func.func @transform_3(%arg0: i32) -> (i32, i32) {
    %c0_i32 = arith.constant 0 : i32
    %c0_i32_0 = arith.constant 0 : i32
    %c0_i32_1 = arith.constant 0 : i32
    return %c0_i32, %c0_i32_0 : i32, i32
  }
  func.func @transform_4(%arg0: i32) -> (i32, i32, i32) {
    %c0_i32 = arith.constant 0 : i32
    %c0_i32_0 = arith.constant 0 : i32
    %c0_i32_1 = arith.constant 0 : i32
    %c0_i32_2 = arith.constant 0 : i32
    return %c0_i32, %c0_i32_0, %c0_i32_1 : i32, i32, i32
  }
  func.func @transform_5(%arg0: i32) -> (i32, i32, i32) {
    %c0_i32 = arith.constant 0 : i32
    %c0_i32_0 = arith.constant 0 : i32
    %c0_i32_1 = arith.constant 0 : i32
    %c0_i32_2 = arith.constant 0 : i32
    return %c0_i32, %c0_i32_0, %c0_i32_1 : i32, i32, i32
  }
  func.func @transform_6(%arg0: i32) -> (i32, i32, i32) {
    %c0_i32 = arith.constant 0 : i32
    %c0_i32_0 = arith.constant 0 : i32
    %c0_i32_1 = arith.constant 0 : i32
    %c0_i32_2 = arith.constant 0 : i32
    return %c0_i32, %c0_i32_0, %c0_i32_1 : i32, i32, i32
  }
  func.func @transform_7(%arg0: i32) -> (i32, i32, i32) {
    %c0_i32 = arith.constant 0 : i32
    %c0_i32_0 = arith.constant 0 : i32
    %c0_i32_1 = arith.constant 0 : i32
    %c0_i32_2 = arith.constant 0 : i32
    return %c0_i32, %c0_i32_0, %c0_i32_1 : i32, i32, i32
  }
  func.func @transform_8(%arg0: i32) -> (i32, i32) {
    %c0_i32 = arith.constant 0 : i32
    %c0_i32_0 = arith.constant 0 : i32
    %c0_i32_1 = arith.constant 0 : i32
    return %c0_i32, %c0_i32_0 : i32, i32
  }
  func.func @transform_9(%arg0: i32) -> (i32, i32) {
    %c0_i32 = arith.constant 0 : i32
    %c0_i32_0 = arith.constant 0 : i32
    %c0_i32_1 = arith.constant 0 : i32
    return %c0_i32, %c0_i32_0 : i32, i32
  }
  func.func @transform_10(%arg0: i32) -> (i32, i32, i32) {
    %c0_i32 = arith.constant 0 : i32
    %c0_i32_0 = arith.constant 0 : i32
    %c0_i32_1 = arith.constant 0 : i32
    return %arg0, %c0_i32, %c0_i32_0 : i32, i32, i32
  }
}

</mosaic_0001>

<llo_original>
// kernel: tpu_custom_call.1
$region0: #{tpu_custom_call.1}
  #allocation0 [shape = 'u32[]', space=smem, size = 0x4, offset = 0x4, fixed_abs, tag = 'smem constant byte address 0x4 - core index']
  #allocation1 [shape = 'u32[144,128]{1,0:T(1,128)}', space=vmem, size = 0x12000, scoped, tag = 'internal scratch']
  #allocation2 [shape = 'f32[64,256]{1,0:T(8,128)}', space=vmem, size = 0x10000, scoped, tag = 'scratch operand']
  %s0 = inlined_call_operand.vmem [shape: f32[2,4,256], index: 0, kind: input, shape index: {}]
  %s1 = inlined_call_operand.hbm [shape: f32[256,256], index: 1, kind: input, shape index: {}]
  %s2 = inlined_call_operand.vmem [shape: f32[16,4], index: 2, kind: input, shape index: {}]
  %s3 = inlined_call_operand.vmem [shape: f32[16,1], index: 3, kind: input, shape index: {}]
  %s4 = inlined_call_operand.vmem [shape: f32[3,16,16], index: 4, kind: input, shape index: {}]
  %s5 = inlined_call_operand.vmem [shape: f32[3,16,1], index: 5, kind: input, shape index: {}]
  %s6 = inlined_call_operand.vmem [shape: f32[3,16,16], index: 6, kind: input, shape index: {}]
  %s7 = inlined_call_operand.vmem [shape: f32[3,16,1], index: 7, kind: input, shape index: {}]
  %s8 = inlined_call_operand.vmem [shape: f32[4,64], index: 8, kind: input, shape index: {}]
  %s9 = inlined_call_operand.vmem [shape: f32[4,1], index: 9, kind: input, shape index: {}]
  %s10 = inlined_call_operand.hbm [shape: f32[2,4,256], index: 10, kind: output, shape index: {}]
  %s11 = sld [smem:[#allocation0]]
  $region77: #{tpu_custom_call.1} parent=0
    _
  %s13 = ssub.s32 1, %s11
  %s14 = scalar_select 0, %s13, %s11
  $region1: #{tpu_custom_call.1} parent=0
    #allocation3 [shape = 'u8[262144]{0}', space=vmem, size = 0x40000, scoped, tag = 'input window, operand 1, single buffered']
    #allocation4 [shape = 's32[2]{0}', space=sflag, size = 0x8, scoped, tag = 'scoped memory for tpu_custom_call.1']
    #allocation5 [shape = 's32[2]{0}', space=sflag, size = 0x8, scoped, tag = 'scoped memory for tpu_custom_call.1']
    #allocation6 [shape = 'u8[8192]{0}', space=vmem, size = 0x2000, scoped, tag = 'output window, operand 0']
    %15 = vsyncpa [#allocation4], 0
    %16 = vsyncpa [#allocation5], 0
    %s17 = scalar_lea.sflag [#allocation5], 1
    %18 = vsyncpa %s17, 0
    loop: start=0, step=1, limit=4
    $region2: #{tpu_custom_call.1} parent=1 // loop_pre_header
      _
    $region3: #{tpu_custom_call.1} parent=1 // loop_header
      %s20 = sphi 0, %s24
      %p21 = scmp.ge.s32.totalorder %s20, 4
      %s30 = sphi 0, %s32
      %s33 = sphi 0, %s30
      %s34 = sphi 0, %s33
      %s50 = sphi 0, %s34
      %s54 = sphi 0, %s54
      %s56 = sphi 0, %s54
      %s57 = sphi 0, %s56
      %s71 = sphi 0, %s57
      %s75 = sphi 0, %s75
      %s77 = sphi 0, %s75
      %s78 = sphi 0, %s77
      %s92 = sphi 0, %s78
      %s96 = sphi 0, %s96
      %s98 = sphi 0, %s96
      %s99 = sphi 0, %s98
      %s113 = sphi 0, %s99
      %s117 = sphi 0, %s117
      %s119 = sphi 0, %s117
      %s120 = sphi 0, %s119
      %s134 = sphi 0, %s120
      %s138 = sphi 0, %s138
      %s140 = sphi 0, %s138
      %s141 = sphi 0, %s140
      %s155 = sphi 0, %s141
      %s159 = sphi 0, %s159
      %s161 = sphi 0, %s159
      %s162 = sphi 0, %s161
      %s176 = sphi 0, %s162
      %s180 = sphi 0, %s180
      %s182 = sphi 0, %s180
      %s183 = sphi 0, %s182
      %s197 = sphi 0, %s183
      %s201 = sphi 0, %s201
      %s203 = sphi 0, %s201
      %s204 = sphi 0, %s203
      %s218 = sphi 0, %s204
      %s222 = sphi 0, %s222
      %s224 = sphi 0, %s222
      %s225 = sphi 0, %s224
      %s239 = sphi 0, %s225
      %s245 = sphi 0, %s247
      %s248 = sphi 0, %s245
      %s249 = sphi 0, %s248
      %s265 = sphi 0, %s249
    $region4: #{tpu_custom_call.1} parent=1 // loop_header_branch
      %23 = sbr.rel (%p21) target = $region8
    $region5: #{tpu_custom_call.1} parent=1 // loop_body
      %s25 = ssub.s32 %s20, 1
      %s26 = ssub.s32 %s20, 2
      %s27 = sadd.s32 %s20, 1
      %s28 = ssub.s32 %s20, %s27
      %p29 = scmp.eq.s32.totalorder %s28, 0
      %s31 = sadd.s32 %s30, 1
      %s32 = scalar_select %p29, %s30, %s31
      %p35 = pneg %p29
      %p36 = scmp.eq.s32.totalorder %s20, 1
      %p37 = por %p35, %p36
      %p38 = scmp.ne.s32.totalorder %s30, %s33
      %p39 = scmp.eq.s32.totalorder %s20, 0
      %p40 = por %p38, %p39
      %p41 = scmp.ne.s32.totalorder %s30, %s33
      %p42 = scmp.eq.s32.totalorder %s25, 1
      %p43 = por %p41, %p42
      %p44 = scmp.ne.s32.totalorder %s33, %s34
      %p45 = scmp.eq.s32.totalorder %s25, 0
      %p46 = por %p44, %p45
      %p47 = scmp.ne.s32.totalorder %s33, %s34
      %p48 = scmp.eq.s32.totalorder %s26, 1
      %p49 = por %p47, %p48
      %p51 = scmp.ne.s32.totalorder %s34, %s50
      %p52 = scmp.eq.s32.totalorder %s26, 0
      %p53 = por %p51, %p52
      %s55 = sadd.s32 %s54, 1
      %p58 = scmp.eq.s32.totalorder %s20, 1
      %p59 = scmp.ne.s32.totalorder %s54, %s56
      %p60 = scmp.eq.s32.totalorder %s20, 0
      %p61 = por %p59, %p60
      %p62 = scmp.ne.s32.totalorder %s54, %s56
      %p63 = scmp.eq.s32.totalorder %s25, 1
      %p64 = por %p62, %p63
      %p65 = scmp.ne.s32.totalorder %s56, %s57
      %p66 = scmp.eq.s32.totalorder %s25, 0
      %p67 = por %p65, %p66
      %p68 = scmp.ne.s32.totalorder %s56, %s57
      %p69 = scmp.eq.s32.totalorder %s26, 1
      %p70 = por %p68, %p69
      %p72 = scmp.ne.s32.totalorder %s57, %s71
      %p73 = scmp.eq.s32.totalorder %s26, 0
      %p74 = por %p72, %p73
      %s76 = sadd.s32 %s75, 1
      %p79 = scmp.eq.s32.totalorder %s20, 1
      %p80 = scmp.ne.s32.totalorder %s75, %s77
      %p81 = scmp.eq.s32.totalorder %s20, 0
      %p82 = por %p80, %p81
      %p83 = scmp.ne.s32.totalorder %s75, %s77
      %p84 = scmp.eq.s32.totalorder %s25, 1
      %p85 = por %p83, %p84
      %p86 = scmp.ne.s32.totalorder %s77, %s78
      %p87 = scmp.eq.s32.totalorder %s25, 0
      %p88 = por %p86, %p87
      %p89 = scmp.ne.s32.totalorder %s77, %s78
      %p90 = scmp.eq.s32.totalorder %s26, 1
      %p91 = por %p89, %p90
      %p93 = scmp.ne.s32.totalorder %s78, %s92
      %p94 = scmp.eq.s32.totalorder %s26, 0
      %p95 = por %p93, %p94
      %s97 = sadd.s32 %s96, 1
      %p100 = scmp.eq.s32.totalorder %s20, 1
      %p101 = scmp.ne.s32.totalorder %s96, %s98
      %p102 = scmp.eq.s32.totalorder %s20, 0
      %p103 = por %p101, %p102
      %p104 = scmp.ne.s32.totalorder %s96, %s98
      %p105 = scmp.eq.s32.totalorder %s25, 1
      %p106 = por %p104, %p105
      %p107 = scmp.ne.s32.totalorder %s98, %s99
      %p108 = scmp.eq.s32.totalorder %s25, 0
      %p109 = por %p107, %p108
      %p110 = scmp.ne.s32.totalorder %s98, %s99
      %p111 = scmp.eq.s32.totalorder %s26, 1
      %p112 = por %p110, %p111
      %p114 = scmp.ne.s32.totalorder %s99, %s113
      %p115 = scmp.eq.s32.totalorder %s26, 0
      %p116 = por %p114, %p115
      %s118 = sadd.s32 %s117, 1
      %p121 = scmp.eq.s32.totalorder %s20, 1
      %p122 = scmp.ne.s32.totalorder %s117, %s119
      %p123 = scmp.eq.s32.totalorder %s20, 0
      %p124 = por %p122, %p123
      %p125 = scmp.ne.s32.totalorder %s117, %s119
      %p126 = scmp.eq.s32.totalorder %s25, 1
      %p127 = por %p125, %p126
      %p128 = scmp.ne.s32.totalorder %s119, %s120
      %p129 = scmp.eq.s32.totalorder %s25, 0
      %p130 = por %p128, %p129
      %p131 = scmp.ne.s32.totalorder %s119, %s120
      %p132 = scmp.eq.s32.totalorder %s26, 1
      %p133 = por %p131, %p132
      %p135 = scmp.ne.s32.totalorder %s120, %s134
      %p136 = scmp.eq.s32.totalorder %s26, 0
      %p137 = por %p135, %p136
      %s139 = sadd.s32 %s138, 1
      %p142 = scmp.eq.s32.totalorder %s20, 1
      %p143 = scmp.ne.s32.totalorder %s138, %s140
      %p144 = scmp.eq.s32.totalorder %s20, 0
      %p145 = por %p143, %p144
      %p146 = scmp.ne.s32.totalorder %s138, %s140
      %p147 = scmp.eq.s32.totalorder %s25, 1
      %p148 = por %p146, %p147
      %p149 = scmp.ne.s32.totalorder %s140, %s141
      %p150 = scmp.eq.s32.totalorder %s25, 0
      %p151 = por %p149, %p150
      %p152 = scmp.ne.s32.totalorder %s140, %s141
      %p153 = scmp.eq.s32.totalorder %s26, 1
      %p154 = por %p152, %p153
      %p156 = scmp.ne.s32.totalorder %s141, %s155
      %p157 = scmp.eq.s32.totalorder %s26, 0
      %p158 = por %p156, %p157
      %s160 = sadd.s32 %s159, 1
      %p163 = scmp.eq.s32.totalorder %s20, 1
      %p164 = scmp.ne.s32.totalorder %s159, %s161
      %p165 = scmp.eq.s32.totalorder %s20, 0
      %p166 = por %p164, %p165
      %p167 = scmp.ne.s32.totalorder %s159, %s161
      %p168 = scmp.eq.s32.totalorder %s25, 1
      %p169 = por %p167, %p168
      %p170 = scmp.ne.s32.totalorder %s161, %s162
      %p171 = scmp.eq.s32.totalorder %s25, 0
      %p172 = por %p170, %p171
      %p173 = scmp.ne.s32.totalorder %s161, %s162
      %p174 = scmp.eq.s32.totalorder %s26, 1
      %p175 = por %p173, %p174
      %p177 = scmp.ne.s32.totalorder %s162, %s176
      %p178 = scmp.eq.s32.totalorder %s26, 0
      %p179 = por %p177, %p178
      %s181 = sadd.s32 %s180, 1
      %p184 = scmp.eq.s32.totalorder %s20, 1
      %p185 = scmp.ne.s32.totalorder %s180, %s182
      %p186 = scmp.eq.s32.totalorder %s20, 0
      %p187 = por %p185, %p186
      %p188 = scmp.ne.s32.totalorder %s180, %s182
      %p189 = scmp.eq.s32.totalorder %s25, 1
      %p190 = por %p188, %p189
      %p191 = scmp.ne.s32.totalorder %s182, %s183
      %p192 = scmp.eq.s32.totalorder %s25, 0
      %p193 = por %p191, %p192
      %p194 = scmp.ne.s32.totalorder %s182, %s183
      %p195 = scmp.eq.s32.totalorder %s26, 1
      %p196 = por %p194, %p195
      %p198 = scmp.ne.s32.totalorder %s183, %s197
      %p199 = scmp.eq.s32.totalorder %s26, 0
      %p200 = por %p198, %p199
      %s202 = sadd.s32 %s201, 1
      %p205 = scmp.eq.s32.totalorder %s20, 1
      %p206 = scmp.ne.s32.totalorder %s201, %s203
      %p207 = scmp.eq.s32.totalorder %s20, 0
      %p208 = por %p206, %p207
      %p209 = scmp.ne.s32.totalorder %s201, %s203
      %p210 = scmp.eq.s32.totalorder %s25, 1
      %p211 = por %p209, %p210
      %p212 = scmp.ne.s32.totalorder %s203, %s204
      %p213 = scmp.eq.s32.totalorder %s25, 0
      %p214 = por %p212, %p213
      %p215 = scmp.ne.s32.totalorder %s203, %s204
      %p216 = scmp.eq.s32.totalorder %s26, 1
      %p217 = por %p215, %p216
      %p219 = scmp.ne.s32.totalorder %s204, %s218
      %p220 = scmp.eq.s32.totalorder %s26, 0
      %p221 = por %p219, %p220
      %s223 = sadd.s32 %s222, 1
      %p226 = scmp.eq.s32.totalorder %s20, 1
      %p227 = scmp.ne.s32.totalorder %s222, %s224
      %p228 = scmp.eq.s32.totalorder %s20, 0
      %p229 = por %p227, %p228
      %p230 = scmp.ne.s32.totalorder %s222, %s224
      %p231 = scmp.eq.s32.totalorder %s25, 1
      %p232 = por %p230, %p231
      %p233 = scmp.ne.s32.totalorder %s224, %s225
      %p234 = scmp.eq.s32.totalorder %s25, 0
      %p235 = por %p233, %p234
      %p236 = scmp.ne.s32.totalorder %s224, %s225
      %p237 = scmp.eq.s32.totalorder %s26, 1
      %p238 = por %p236, %p237
      %p240 = scmp.ne.s32.totalorder %s225, %s239
      %p241 = scmp.eq.s32.totalorder %s26, 0
      %p242 = por %p240, %p241
      %s243 = ssub.s32 %s20, %s27
      %p244 = scmp.eq.s32.totalorder %s243, 0
      %s246 = sadd.s32 %s245, 1
      %s247 = scalar_select %p244, %s245, %s246
      %p250 = pneg %p244
      %p251 = scmp.eq.s32.totalorder %s20, 1
      %p252 = por %p250, %p251
      %p253 = scmp.ne.s32.totalorder %s245, %s248
      %p254 = scmp.eq.s32.totalorder %s20, 0
      %p255 = por %p253, %p254
      %p256 = scmp.ne.s32.totalorder %s245, %s248
      %p257 = scmp.eq.s32.totalorder %s25, 1
      %p258 = por %p256, %p257
      %p259 = scmp.ne.s32.totalorder %s248, %s249
      %p260 = scmp.eq.s32.totalorder %s25, 0
      %p261 = por %p259, %p260
      %p262 = scmp.ne.s32.totalorder %s248, %s249
      %p263 = scmp.eq.s32.totalorder %s26, 1
      %p264 = por %p262, %p263
      %p266 = scmp.ne.s32.totalorder %s249, %s265
      %p267 = scmp.eq.s32.totalorder %s26, 0
      %p268 = por %p266, %p267
      %p269 = scmp.le.s32.totalorder 1, %s20
      %p270 = scmp.lt.s32.totalorder %s20, 3
      %p271 = pnand %p269, %p270
      %p272 = pneg %p271
      // Predicated region
      $region9: #{tpu_custom_call.1} parent=5 // pred_check
        _
      $region10: #{tpu_custom_call.1} parent=5 // pred_check_branch
        %274 = sbr.rel (%p271) target = $region12
      $region11: #{tpu_custom_call.1} parent=5 // pred_region
        %s275 = ssub.s32 %s20, 1
        // Predicated region
        $region13: #{tpu_custom_call.1} parent=11 // pred_check
          %p276 = pneg %p67
        $region14: #{tpu_custom_call.1} parent=11 // pred_check_branch
          %278 = sbr.rel (%p276) target = $region16
        $region15: #{tpu_custom_call.1} parent=11 // pred_region
          %s280 = ssub.s32 8192, 8192
          %281 = vsyncadd [#allocation4], %s280
          %s282 = sshll.u32 [#allocation3], 4
          %s283 = int_to_ptr.vmem [resolvable:$true] %s282
          %288 = dma.hbm_to_vmem [thread:$0]  %s1, 8192, %s283, [#allocation4], 256, 256, 16
        $region16: #{tpu_custom_call.1} parent=11 // pred_fallthru
          _
        // Predicated region
        $region17: #{tpu_custom_call.1} parent=11 // pred_check
          %p289 = pneg %p88
        $region18: #{tpu_custom_call.1} parent=11 // pred_check_branch
          %291 = sbr.rel (%p289) target = $region20
        $region19: #{tpu_custom_call.1} parent=11 // pred_region
          _
        $region20: #{tpu_custom_call.1} parent=11 // pred_fallthru
          _
        // Predicated region
        $region21: #{tpu_custom_call.1} parent=11 // pred_check
          %p292 = pneg %p109
        $region22: #{tpu_custom_call.1} parent=11 // pred_check_branch
          %294 = sbr.rel (%p292) target = $region24
        $region23: #{tpu_custom_call.1} parent=11 // pred_region
          _
        $region24: #{tpu_custom_call.1} parent=11 // pred_fallthru
          _
        // Predicated region
        $region25: #{tpu_custom_call.1} parent=11 // pred_check
          %p295 = pneg %p130
        $region26: #{tpu_custom_call.1} parent=11 // pred_check_branch
          %297 = sbr.rel (%p295) target = $region28
        $region27: #{tpu_custom_call.1} parent=11 // pred_region
          _
        $region28: #{tpu_custom_call.1} parent=11 // pred_fallthru
          _
        // Predicated region
        $region29: #{tpu_custom_call.1} parent=11 // pred_check
          %p298 = pneg %p151
        $region30: #{tpu_custom_call.1} parent=11 // pred_check_branch
          %300 = sbr.rel (%p298) target = $region32
        $region31: #{tpu_custom_call.1} parent=11 // pred_region
          _
        $region32: #{tpu_custom_call.1} parent=11 // pred_fallthru
          _
        // Predicated region
        $region33: #{tpu_custom_call.1} parent=11 // pred_check
          %p301 = pneg %p172
        $region34: #{tpu_custom_call.1} parent=11 // pred_check_branch
          %303 = sbr.rel (%p301) target = $region36
        $region35: #{tpu_custom_call.1} parent=11 // pred_region
          _
        $region36: #{tpu_custom_call.1} parent=11 // pred_fallthru
          _
        // Predicated region
        $region37: #{tpu_custom_call.1} parent=11 // pred_check
          %p304 = pneg %p193
        $region38: #{tpu_custom_call.1} parent=11 // pred_check_branch
          %306 = sbr.rel (%p304) target = $region40
        $region39: #{tpu_custom_call.1} parent=11 // pred_region
          _
        $region40: #{tpu_custom_call.1} parent=11 // pred_fallthru
          _
        // Predicated region
        $region41: #{tpu_custom_call.1} parent=11 // pred_check
          %p307 = pneg %p214
        $region42: #{tpu_custom_call.1} parent=11 // pred_check_branch
          %309 = sbr.rel (%p307) target = $region44
        $region43: #{tpu_custom_call.1} parent=11 // pred_region
          _
        $region44: #{tpu_custom_call.1} parent=11 // pred_fallthru
          _
        // Predicated region
        $region45: #{tpu_custom_call.1} parent=11 // pred_check
          %p310 = pneg %p235
        $region46: #{tpu_custom_call.1} parent=11 // pred_check_branch
          %312 = sbr.rel (%p310) target = $region48
        $region47: #{tpu_custom_call.1} parent=11 // pred_region
          _
        $region48: #{tpu_custom_call.1} parent=11 // pred_fallthru
          _
      $region12: #{tpu_custom_call.1} parent=5 // pred_fallthru
        _
      %p313 = scmp.lt.s32.totalorder %s20, 2
      // Predicated region
      $region49: #{tpu_custom_call.1} parent=5 // pred_check
        %p314 = pneg %p313
      $region50: #{tpu_custom_call.1} parent=5 // pred_check_branch
        %316 = sbr.rel (%p314) target = $region52
      $region51: #{tpu_custom_call.1} parent=5 // pred_region
        // Predicated region
        $region53: #{tpu_custom_call.1} parent=51 // pred_check
          %p317 = pneg %p40
        $region54: #{tpu_custom_call.1} parent=51 // pred_check_branch
          %319 = sbr.rel (%p317) target = $region56
        $region55: #{tpu_custom_call.1} parent=51 // pred_region
          %p320 = scmp.lt.s32.totalorder %s20, 1
          %s321 = scalar_select %p320, %s20, 1
          %s322 = smul.addr %s321, 2
          %s323 = smul.addr %s322, 4
          %s324 = scalar_lea.vmem %s0, %s323
        $region56: #{tpu_custom_call.1} parent=51 // pred_fallthru
          _
      $region52: #{tpu_custom_call.1} parent=5 // pred_fallthru
        _
      %p325 = scmp.le.s32.totalorder 1, %s20
      %p326 = scmp.lt.s32.totalorder %s20, 3
      %p327 = pnand %p325, %p326
      %p328 = pneg %p327
      // Predicated region
      $region57: #{tpu_custom_call.1} parent=5 // pred_check
        _
      $region58: #{tpu_custom_call.1} parent=5 // pred_check_branch
        %330 = sbr.rel (%p327) target = $region60
      $region59: #{tpu_custom_call.1} parent=5 // pred_region
        %s331 = ssub.s32 %s20, 1
        // Predicated region
        $region61: #{tpu_custom_call.1} parent=59 // pred_check
          %p332 = pneg %p67
        $region62: #{tpu_custom_call.1} parent=59 // pred_check_branch
          %334 = sbr.rel (%p332) target = $region64
        $region63: #{tpu_custom_call.1} parent=59 // pred_region
          %335 = dma.done [#allocation4], 8192
        $region64: #{tpu_custom_call.1} parent=59 // pred_fallthru
          _
        %p336 = scmp.lt.s32.totalorder %s25, 1
        %s337 = scalar_select %p336, %s25, 1
        %s338 = smul.addr %s337, 2
        %s339 = smul.addr %s338, 4
        %s340 = scalar_lea.vmem %s0, %s339
        %p341 = pneg %p46
        %p342 = pneg %p43
        %p343 = pneg %p67
        %p344 = pneg %p64
        %p345 = pneg %p88
        %p346 = pneg %p85
        %p347 = pneg %p109
        %p348 = pneg %p106
        %p349 = pneg %p130
        %p350 = pneg %p127
        %p351 = pneg %p151
        %p352 = pneg %p148
        %p353 = pneg %p172
        %p354 = pneg %p169
        %p355 = pneg %p193
        %p356 = pneg %p190
        %p357 = pneg %p214
        %p358 = pneg %p211
        %p359 = pneg %p235
        %p360 = pneg %p232
        %p361 = pneg %p261
        %p362 = pneg %p258
        %s363 = sand.u32 %s248, 1
        %s364 = scalar_lea.sflag [#allocation5], %s363
        %s365 = sand.u32 %s248, 1
        %s366 = smul.addr %s365, 8
        %s367 = scalar_lea.vmem [#allocation6], %s366
        %p368 = scmp.lt.s32.totalorder %s25, 1
        %s369 = scalar_select %p368, %s25, 1
        %s370 = smul.addr %s369, 2
        %s371 = smul.addr %s370, 4
        %s372 = scalar_lea.vmem %s0, %s371
        %v373 = vld [vmem:[%s372] sm:$0xff]
        %v374 = vld [vmem:[%s2] sm:$0xff]
        %v375 = vld [vmem:[%s2 + $0x8] sm:$0xff]
        %v376 = vld [vmem:[%s3] sm:$0xff]
        %v377 = vld [vmem:[%s3 + $0x8] sm:$0xff]
        %379 = vset.pattern.permute.xlu0 0
        %380 = vperm.xlu0 %379, %v376
        %v381 = vpop.permute.xlu0 %380
        %384 = vset.pattern.permute.xlu0 0
        %385 = vperm.xlu0 %384, %v377
        %v386 = vpop.permute.xlu0 %385
        %v389 = vcombine.high %v373, %v373
        %vm390 = vcmask 31744
        %v392 = vsel %vm390, %v374, 0
        %v395 = vsel %vm390, %v375, 0
        %vm397 = vcmask 1043456
        %v398 = vsel %vm397, %v373, 0
        %v400 = vsel %vm397, %v389, 0
        %402 = vmatprep.subr.mxu0 0.0
        %403 = vmatpush1.msra.mxu0 0.0
        %404 = vmatprep.subr.mxu0 0.0
        %405 = vmatpush1.msra.mxu0 0.0
        %406 = vmatprep.subr.mxu0 0.0
        %407 = vmatpush1.msra.mxu0 0.0
        %408 = vmatprep.subr.mxu0 0.0
        %409 = vmatpush1.msra.mxu0 0.0
        %410 = vmatprep.subr.mxu0 0.0
        %411 = vmatpush1.msra.mxu0 0.0
        %412 = vmatprep.subr.mxu0 0.0
        %413 = vmatpush1.msra.mxu0 0.0
        %414 = vmatprep.subr.mxu0 0.0
        %415 = vmatpush1.msra.mxu0 0.0
        %416 = vmatprep.subr.mxu0 0.0
        %417 = vmatpush1.msra.mxu0 0.0
        %418 = vmatprep.subr.mxu0 0.0
        %419 = vmatpush1.msra.mxu0 0.0
        %420 = vmatprep.subr.mxu0 0.0
        %421 = vmatpush1.msra.mxu0 0.0
        %422 = vmatprep.subr.mxu0 0.0
        %423 = vmatpush1.msra.mxu0 0.0
        %424 = vmatprep.subr.mxu0 0.0
        %425 = vmatpush1.msra.mxu0 0.0
        %426 = vmatprep.subr.mxu0 0.0
        %427 = vmatpush1.msra.mxu0 0.0
        %428 = vmatprep.subr.mxu0 0.0
        %429 = vmatpush1.msra.mxu0 0.0
        %430 = vmatprep.subr.mxu0 0.0
        %431 = vmatpush1.msra.mxu0 0.0
        %432 = vmatprep.subr.mxu0 %v400
        %433 = vmatpush1.msra.mxu0 %v398
        %434 = vmatprep.subr.mxu0 0.0
        %435 = vmatpush2.msra.mxu0 0.0
        %436 = vmatprep.subr.mxu0 0.0
        %437 = vmatpush2.msra.mxu0 0.0
        %438 = vmatprep.subr.mxu0 0.0
        %439 = vmatpush2.msra.mxu0 0.0
        %440 = vmatprep.subr.mxu0 0.0
        %441 = vmatpush2.msra.mxu0 0.0
        %442 = vmatprep.subr.mxu0 0.0
        %443 = vmatpush2.msra.mxu0 0.0
        %444 = vmatprep.subr.mxu0 0.0
        %445 = vmatpush2.msra.mxu0 0.0
        %446 = vmatprep.subr.mxu0 0.0
        %447 = vmatpush2.msra.mxu0 0.0
        %448 = vmatprep.subr.mxu0 0.0
        %449 = vmatpush2.msra.mxu0 0.0
        %450 = vmatprep.subr.mxu0 0.0
        %451 = vmatpush2.msra.mxu0 0.0
        %452 = vmatprep.subr.mxu0 0.0
        %453 = vmatpush2.msra.mxu0 0.0
        %454 = vmatprep.subr.mxu0 0.0
        %455 = vmatpush2.msra.mxu0 0.0
        %456 = vmatprep.subr.mxu0 0.0
        %457 = vmatpush2.msra.mxu0 0.0
        %458 = vmatprep.subr.mxu0 0.0
        %459 = vmatpush2.msra.mxu0 0.0
        %460 = vmatprep.subr.mxu0 0.0
        %461 = vmatpush2.msra.mxu0 0.0
        %462 = vmatprep.subr.mxu0 0.0
        %463 = vmatpush2.msra.mxu0 0.0
        %464 = vmatprep.subr.mxu0 0.0
        %465 = vmatpush2.msra.mxu0 0.0
        %466 = vmatprep.mubr.f32.mxu0 0.0
        %467 = vmatmul.mubr.f32.gmra.mxu0 %v392
        %v468 = vpop.f32.mrf.mxu0
        %v469 = vadd.f32 %v381, %v468
        %v470 = vpop.f32.mrf.mxu0
        %v471 = vadd.f32 %v381, %v470
        %472 = vmatprep.mubr.f32.mxu0 0.0
        %473 = vmatmul.mubr.f32.gmra.mxu0 %v395
        %v474 = vpop.f32.mrf.mxu0
        %v475 = vadd.f32 %v386, %v474
        %v476 = vpop.f32.mrf.mxu0
        %v477 = vadd.f32 %v386, %v476
        %478 = vdwg.mxu0
        %v479 = vtanh.pop %v469
        %v480 = vtanh.pop %v471
        %v481 = vtanh.pop %v475
        %v482 = vtanh.pop %v477
        %v483 = vmul.f32 %v479, 0.5
        %v484 = vmul.f32 %v480, 0.5
        %v485 = vmul.f32 %v481, 0.5
        %v486 = vmul.f32 %v482, 0.5
        %v487 = vadd.f32 %v483, 0.5
        %v488 = vadd.f32 %v484, 0.5
        %v489 = vadd.f32 %v485, 0.5
        %v490 = vadd.f32 %v486, 0.5
        %491 = vst [vmem:[#allocation2] sm:$0xff] %v487
        %492 = vst [vmem:[#allocation2 + $0x8] sm:$0xff] %v488
        %493 = vst [vmem:[#allocation2 + $0x10] sm:$0xff] %v489
        %494 = vst [vmem:[#allocation2 + $0x18] sm:$0xff] %v490
        %v495 = vld [vmem:[%s4] sm:$0xff]
        %v496 = vld [vmem:[%s4 + $0x8] sm:$0xff]
        %v497 = vld [vmem:[%s5] sm:$0xff]
        %v498 = vld [vmem:[%s5 + $0x8] sm:$0xff]
        %v499 = vld [vmem:[#allocation3] sm:$0xff]
        %v500 = vld [vmem:[#allocation3 + $0x8] sm:$0xff]
        %v501 = vld [vmem:[#allocation3 + $0x10] sm:$0xff]
        %v502 = vld [vmem:[#allocation3 + $0x18] sm:$0xff]
        %v503 = vld [vmem:[#allocation3 + $0x20] sm:$0xff]
        %v504 = vld [vmem:[#allocation3 + $0x28] sm:$0xff]
        %v505 = vld [vmem:[#allocation3 + $0x30] sm:$0xff]
        %v506 = vld [vmem:[#allocation3 + $0x38] sm:$0xff]
        %v507 = vld [vmem:[#allocation3 + $0x40] sm:$0xff]
        %v508 = vld [vmem:[#allocation3 + $0x48] sm:$0xff]
        %v509 = vld [vmem:[#allocation3 + $0x50] sm:$0xff]
        %v510 = vld [vmem:[#allocation3 + $0x58] sm:$0xff]
        %v511 = vld [vmem:[#allocation3 + $0x60] sm:$0xff]
        %v512 = vld [vmem:[#allocation3 + $0x68] sm:$0xff]
        %v513 = vld [vmem:[#allocation3 + $0x70] sm:$0xff]
        %v514 = vld [vmem:[#allocation3 + $0x78] sm:$0xff]
        %v515 = vld [vmem:[#allocation3 + $0x80] sm:$0xff]
        %v516 = vld [vmem:[#allocation3 + $0x88] sm:$0xff]
        %v517 = vld [vmem:[#allocation3 + $0x90] sm:$0xff]
        %v518 = vld [vmem:[#allocation3 + $0x98] sm:$0xff]
        %v519 = vld [vmem:[#allocation3 + $0xa0] sm:$0xff]
        %v520 = vld [vmem:[#allocation3 + $0xa8] sm:$0xff]
        %v521 = vld [vmem:[#allocation3 + $0xb0] sm:$0xff]
        %v522 = vld [vmem:[#allocation3 + $0xb8] sm:$0xff]
        %v523 = vld [vmem:[#allocation3 + $0xc0] sm:$0xff]
        %v524 = vld [vmem:[#allocation3 + $0xc8] sm:$0xff]
        %v525 = vld [vmem:[#allocation3 + $0xd0] sm:$0xff]
        %v526 = vld [vmem:[#allocation3 + $0xd8] sm:$0xff]
        %v527 = vld [vmem:[#allocation3 + $0xe0] sm:$0xff]
        %v528 = vld [vmem:[#allocation3 + $0xe8] sm:$0xff]
        %v529 = vld [vmem:[#allocation3 + $0xf0] sm:$0xff]
        %v530 = vld [vmem:[#allocation3 + $0xf8] sm:$0xff]
        %v531 = vld [vmem:[#allocation3 + $0x100] sm:$0xff]
        %v532 = vld [vmem:[#allocation3 + $0x108] sm:$0xff]
        %v533 = vld [vmem:[#allocation3 + $0x110] sm:$0xff]
        %v534 = vld [vmem:[#allocation3 + $0x118] sm:$0xff]
        %v535 = vld [vmem:[#allocation3 + $0x120] sm:$0xff]
        %v536 = vld [vmem:[#allocation3 + $0x128] sm:$0xff]
        %v537 = vld [vmem:[#allocation3 + $0x130] sm:$0xff]
        %v538 = vld [vmem:[#allocation3 + $0x138] sm:$0xff]
        %v539 = vld [vmem:[#allocation3 + $0x140] sm:$0xff]
        %v540 = vld [vmem:[#allocation3 + $0x148] sm:$0xff]
        %v541 = vld [vmem:[#allocation3 + $0x150] sm:$0xff]
        %v542 = vld [vmem:[#allocation3 + $0x158] sm:$0xff]
        %v543 = vld [vmem:[#allocation3 + $0x160] sm:$0xff]
        %v544 = vld [vmem:[#allocation3 + $0x168] sm:$0xff]
        %v545 = vld [vmem:[#allocation3 + $0x170] sm:$0xff]
        %v546 = vld [vmem:[#allocation3 + $0x178] sm:$0xff]
        %v547 = vld [vmem:[#allocation3 + $0x180] sm:$0xff]
        %v548 = vld [vmem:[#allocation3 + $0x188] sm:$0xff]
        %v549 = vld [vmem:[#allocation3 + $0x190] sm:$0xff]
        %v550 = vld [vmem:[#allocation3 + $0x198] sm:$0xff]
        %v551 = vld [vmem:[#allocation3 + $0x1a0] sm:$0xff]
        %v552 = vld [vmem:[#allocation3 + $0x1a8] sm:$0xff]
        %v553 = vld [vmem:[#allocation3 + $0x1b0] sm:$0xff]
        %v554 = vld [vmem:[#allocation3 + $0x1b8] sm:$0xff]
        %v555 = vld [vmem:[#allocation3 + $0x1c0] sm:$0xff]
        %v556 = vld [vmem:[#allocation3 + $0x1c8] sm:$0xff]
        %v557 = vld [vmem:[#allocation3 + $0x1d0] sm:$0xff]
        %v558 = vld [vmem:[#allocation3 + $0x1d8] sm:$0xff]
        %v559 = vld [vmem:[#allocation3 + $0x1e0] sm:$0xff]
        %v560 = vld [vmem:[#allocation3 + $0x1e8] sm:$0xff]
        %v561 = vld [vmem:[#allocation3 + $0x1f0] sm:$0xff]
        %v562 = vld [vmem:[#allocation3 + $0x1f8] sm:$0xff]
        %563 = vmatprep.subr.mxu0 %v530
        %564 = vmatpush1.msra.mxu0 %v529
        %565 = vmatprep.subr.mxu0 %v528
        %566 = vmatpush1.msra.mxu0 %v527
        %567 = vmatprep.subr.mxu0 %v526
        %568 = vmatpush1.msra.mxu0 %v525
        %569 = vmatprep.subr.mxu0 %v524
        %570 = vmatpush1.msra.mxu0 %v523
        %571 = vmatprep.subr.mxu0 %v522
        %572 = vmatpush1.msra.mxu0 %v521
        %573 = vmatprep.subr.mxu0 %v520
        %574 = vmatpush1.msra.mxu0 %v519
        %575 = vmatprep.subr.mxu0 %v518
        %576 = vmatpush1.msra.mxu0 %v517
        %577 = vmatprep.subr.mxu0 %v516
        %578 = vmatpush1.msra.mxu0 %v515
        %579 = vmatprep.subr.mxu0 %v514
        %580 = vmatpush1.msra.mxu0 %v513
        %581 = vmatprep.subr.mxu0 %v512
        %582 = vmatpush1.msra.mxu0 %v511
        %583 = vmatprep.subr.mxu0 %v510
        %584 = vmatpush1.msra.mxu0 %v509
        %585 = vmatprep.subr.mxu0 %v508
        %586 = vmatpush1.msra.mxu0 %v507
        %587 = vmatprep.subr.mxu0 %v506
        %588 = vmatpush1.msra.mxu0 %v505
        %589 = vmatprep.subr.mxu0 %v504
        %590 = vmatpush1.msra.mxu0 %v503
        %591 = vmatprep.subr.mxu0 %v502
        %592 = vmatpush1.msra.mxu0 %v501
        %593 = vmatprep.subr.mxu0 %v500
        %594 = vmatpush1.msra.mxu0 %v499
        %595 = vmatprep.subr.mxu0 %v562
        %596 = vmatpush2.msra.mxu0 %v561
        %597 = vmatprep.subr.mxu0 %v560
        %598 = vmatpush2.msra.mxu0 %v559
        %599 = vmatprep.subr.mxu0 %v558
        %600 = vmatpush2.msra.mxu0 %v557
        %601 = vmatprep.subr.mxu0 %v556
        %602 = vmatpush2.msra.mxu0 %v555
        %603 = vmatprep.subr.mxu0 %v554
        %604 = vmatpush2.msra.mxu0 %v553
        %605 = vmatprep.subr.mxu0 %v552
        %606 = vmatpush2.msra.mxu0 %v551
        %607 = vmatprep.subr.mxu0 %v550
        %608 = vmatpush2.msra.mxu0 %v549
        %609 = vmatprep.subr.mxu0 %v548
        %610 = vmatpush2.msra.mxu0 %v547
        %611 = vmatprep.subr.mxu0 %v546
        %612 = vmatpush2.msra.mxu0 %v545
        %613 = vmatprep.subr.mxu0 %v544
        %614 = vmatpush2.msra.mxu0 %v543
        %615 = vmatprep.subr.mxu0 %v542
        %616 = vmatpush2.msra.mxu0 %v541
        %617 = vmatprep.subr.mxu0 %v540
        %618 = vmatpush2.msra.mxu0 %v539
        %619 = vmatprep.subr.mxu0 %v538
        %620 = vmatpush2.msra.mxu0 %v537
        %621 = vmatprep.subr.mxu0 %v536
        %622 = vmatpush2.msra.mxu0 %v535
        %623 = vmatprep.subr.mxu0 %v534
        %624 = vmatpush2.msra.mxu0 %v533
        %625 = vmatprep.subr.mxu0 %v532
        %626 = vmatpush2.msra.mxu0 %v531
        %627 = vmatprep.mubr.f32.mxu0 %v488
        %628 = vmatmul.mubr.f32.gmra.mxu0 %v487
        %v629 = vpop.f32.mrf.mxu0
        %v630 = vadd.f32 0.0, %v629
        %v631 = vpop.f32.mrf.mxu0
        %v632 = vadd.f32 0.0, %v631
        %633 = vmatprep.mubr.f32.mxu0 %v490
        %634 = vmatmul.mubr.f32.gmra.mxu0 %v489
        %v635 = vpop.f32.mrf.mxu0
        %v636 = vadd.f32 0.0, %v635
        %v637 = vpop.f32.mrf.mxu0
        %v638 = vadd.f32 0.0, %v637
        %639 = vdwg.mxu0
        %641 = vset.pattern.permute.xlu0 0
        %642 = vperm.xlu0 %641, %v497
        %v643 = vpop.permute.xlu0 %642
        %646 = vset.pattern.permute.xlu0 0
        %647 = vperm.xlu0 %646, %v498
        %v648 = vpop.permute.xlu0 %647
        %vm650 = vcmask 130048
        %v652 = vsel %vm650, %v495, 0
        %v655 = vsel %vm650, %v496, 0
        %657 = vmatprep.subr.mxu0 0.0
        %658 = vmatpush1.msra.mxu0 0.0
        %659 = vmatprep.subr.mxu0 0.0
        %660 = vmatpush1.msra.mxu0 0.0
        %661 = vmatprep.subr.mxu0 0.0
        %662 = vmatpush1.msra.mxu0 0.0
        %663 = vmatprep.subr.mxu0 0.0
        %664 = vmatpush1.msra.mxu0 0.0
        %665 = vmatprep.subr.mxu0 0.0
        %666 = vmatpush1.msra.mxu0 0.0
        %667 = vmatprep.subr.mxu0 0.0
        %668 = vmatpush1.msra.mxu0 0.0
        %669 = vmatprep.subr.mxu0 0.0
        %670 = vmatpush1.msra.mxu0 0.0
        %671 = vmatprep.subr.mxu0 0.0
        %672 = vmatpush1.msra.mxu0 0.0
        %673 = vmatprep.subr.mxu0 0.0
        %674 = vmatpush1.msra.mxu0 0.0
        %675 = vmatprep.subr.mxu0 0.0
        %676 = vmatpush1.msra.mxu0 0.0
        %677 = vmatprep.subr.mxu0 0.0
        %678 = vmatpush1.msra.mxu0 0.0
        %679 = vmatprep.subr.mxu0 0.0
        %680 = vmatpush1.msra.mxu0 0.0
        %681 = vmatprep.subr.mxu0 0.0
        %682 = vmatpush1.msra.mxu0 0.0
        %683 = vmatprep.subr.mxu0 0.0
        %684 = vmatpush1.msra.mxu0 0.0
        %685 = vmatprep.subr.mxu0 %v638
        %686 = vmatpush1.msra.mxu0 %v636
        %687 = vmatprep.subr.mxu0 %v632
        %688 = vmatpush1.msra.mxu0 %v630
        %689 = vmatprep.subr.mxu0 0.0
        %690 = vmatpush2.msra.mxu0 0.0
        %691 = vmatprep.subr.mxu0 0.0
        %692 = vmatpush2.msra.mxu0 0.0
        %693 = vmatprep.subr.mxu0 0.0
        %694 = vmatpush2.msra.mxu0 0.0
        %695 = vmatprep.subr.mxu0 0.0
        %696 = vmatpush2.msra.mxu0 0.0
        %697 = vmatprep.subr.mxu0 0.0
        %698 = vmatpush2.msra.mxu0 0.0
        %699 = vmatprep.subr.mxu0 0.0
        %700 = vmatpush2.msra.mxu0 0.0
        %701 = vmatprep.subr.mxu0 0.0
        %702 = vmatpush2.msra.mxu0 0.0
        %703 = vmatprep.subr.mxu0 0.0
        %704 = vmatpush2.msra.mxu0 0.0
        %705 = vmatprep.subr.mxu0 0.0
        %706 = vmatpush2.msra.mxu0 0.0
        %707 = vmatprep.subr.mxu0 0.0
        %708 = vmatpush2.msra.mxu0 0.0
        %709 = vmatprep.subr.mxu0 0.0
        %710 = vmatpush2.msra.mxu0 0.0
        %711 = vmatprep.subr.mxu0 0.0
        %712 = vmatpush2.msra.mxu0 0.0
        %713 = vmatprep.subr.mxu0 0.0
        %714 = vmatpush2.msra.mxu0 0.0
        %715 = vmatprep.subr.mxu0 0.0
        %716 = vmatpush2.msra.mxu0 0.0
        %717 = vmatprep.subr.mxu0 0.0
        %718 = vmatpush2.msra.mxu0 0.0
        %719 = vmatprep.subr.mxu0 0.0
        %720 = vmatpush2.msra.mxu0 0.0
        %721 = vmatprep.mubr.f32.mxu0 0.0
        %722 = vmatmul.mubr.f32.gmra.mxu0 %v652
        %v723 = vpop.f32.mrf.mxu0
        %v724 = vadd.f32 %v643, %v723
        %v725 = vpop.f32.mrf.mxu0
        %v726 = vadd.f32 %v643, %v725
        %727 = vmatprep.mubr.f32.mxu0 0.0
        %728 = vmatmul.mubr.f32.gmra.mxu0 %v655
        %v729 = vpop.f32.mrf.mxu0
        %v730 = vadd.f32 %v648, %v729
        %v731 = vpop.f32.mrf.mxu0
        %v732 = vadd.f32 %v648, %v731
        %733 = vdwg.mxu0
        %v734 = vtanh.pop %v724
        %v735 = vtanh.pop %v726
        %v736 = vtanh.pop %v730
        %v737 = vtanh.pop %v732
        %v738 = vmul.f32 %v734, 0.5
        %v739 = vmul.f32 %v735, 0.5
        %v740 = vmul.f32 %v736, 0.5
        %v741 = vmul.f32 %v737, 0.5
        %v742 = vadd.f32 %v738, 0.5
        %v743 = vadd.f32 %v739, 0.5
        %v744 = vadd.f32 %v740, 0.5
        %v745 = vadd.f32 %v741, 0.5
        %746 = vmatprep.subr.mxu0 %v530
        %747 = vmatpush1.msra.mxu0 %v529
        %748 = vmatprep.subr.mxu0 %v528
        %749 = vmatpush1.msra.mxu0 %v527
        %750 = vmatprep.subr.mxu0 %v526
        %751 = vmatpush1.msra.mxu0 %v525
        %752 = vmatprep.subr.mxu0 %v524
        %753 = vmatpush1.msra.mxu0 %v523
        %754 = vmatprep.subr.mxu0 %v522
        %755 = vmatpush1.msra.mxu0 %v521
        %756 = vmatprep.subr.mxu0 %v520
        %757 = vmatpush1.msra.mxu0 %v519
        %758 = vmatprep.subr.mxu0 %v518
        %759 = vmatpush1.msra.mxu0 %v517
        %760 = vmatprep.subr.mxu0 %v516
        %761 = vmatpush1.msra.mxu0 %v515
        %762 = vmatprep.subr.mxu0 %v514
        %763 = vmatpush1.msra.mxu0 %v513
        %764 = vmatprep.subr.mxu0 %v512
        %765 = vmatpush1.msra.mxu0 %v511
        %766 = vmatprep.subr.mxu0 %v510
        %767 = vmatpush1.msra.mxu0 %v509
        %768 = vmatprep.subr.mxu0 %v508
        %769 = vmatpush1.msra.mxu0 %v507
        %770 = vmatprep.subr.mxu0 %v506
        %771 = vmatpush1.msra.mxu0 %v505
        %772 = vmatprep.subr.mxu0 %v504
        %773 = vmatpush1.msra.mxu0 %v503
        %774 = vmatprep.subr.mxu0 %v502
        %775 = vmatpush1.msra.mxu0 %v501
        %776 = vmatprep.subr.mxu0 %v500
        %777 = vmatpush1.msra.mxu0 %v499
        %778 = vmatprep.subr.mxu0 %v562
        %779 = vmatpush2.msra.mxu0 %v561
        %780 = vmatprep.subr.mxu0 %v560
        %781 = vmatpush2.msra.mxu0 %v559
        %782 = vmatprep.subr.mxu0 %v558
        %783 = vmatpush2.msra.mxu0 %v557
        %784 = vmatprep.subr.mxu0 %v556
        %785 = vmatpush2.msra.mxu0 %v555
        %786 = vmatprep.subr.mxu0 %v554
        %787 = vmatpush2.msra.mxu0 %v553
        %788 = vmatprep.subr.mxu0 %v552
        %789 = vmatpush2.msra.mxu0 %v551
        %790 = vmatprep.subr.mxu0 %v550
        %791 = vmatpush2.msra.mxu0 %v549
        %792 = vmatprep.subr.mxu0 %v548
        %793 = vmatpush2.msra.mxu0 %v547
        %794 = vmatprep.subr.mxu0 %v546
        %795 = vmatpush2.msra.mxu0 %v545
        %796 = vmatprep.subr.mxu0 %v544
        %797 = vmatpush2.msra.mxu0 %v543
        %798 = vmatprep.subr.mxu0 %v542
        %799 = vmatpush2.msra.mxu0 %v541
        %800 = vmatprep.subr.mxu0 %v540
        %801 = vmatpush2.msra.mxu0 %v539
        %802 = vmatprep.subr.mxu0 %v538
        %803 = vmatpush2.msra.mxu0 %v537
        %804 = vmatprep.subr.mxu0 %v536
        %805 = vmatpush2.msra.mxu0 %v535
        %806 = vmatprep.subr.mxu0 %v534
        %807 = vmatpush2.msra.mxu0 %v533
        %808 = vmatprep.subr.mxu0 %v532
        %809 = vmatpush2.msra.mxu0 %v531
        %810 = vmatprep.mubr.f32.mxu0 %v743
        %811 = vmatmul.mubr.f32.gmra.mxu0 %v742
        %v812 = vpop.f32.mrf.mxu0
        %v813 = vadd.f32 0.0, %v812
        %v814 = vpop.f32.mrf.mxu0
        %v815 = vadd.f32 0.0, %v814
        %816 = vmatprep.mubr.f32.mxu0 %v745
        %817 = vmatmul.mubr.f32.gmra.mxu0 %v744
        %v818 = vpop.f32.mrf.mxu0
        %v819 = vadd.f32 0.0, %v818
        %v820 = vpop.f32.mrf.mxu0
        %v821 = vadd.f32 0.0, %v820
        %822 = vdwg.mxu0
        %v823 = vmul.f32 %v813, 0.11111111
        %v824 = vmul.f32 %v815, 0.11111111
        %v825 = vmul.f32 %v819, 0.11111111
        %v826 = vmul.f32 %v821, 0.11111111
        %v827 = vsub.f32 %v742, %v823
        %v828 = vsub.f32 %v743, %v824
        %v829 = vsub.f32 %v744, %v825
        %v830 = vsub.f32 %v745, %v826
        %v831 = vld [vmem:[%s6] sm:$0xff]
        %v832 = vld [vmem:[%s6 + $0x8] sm:$0xff]
        %v833 = vld [vmem:[%s7] sm:$0xff]
        %v834 = vld [vmem:[%s7 + $0x8] sm:$0xff]
        %836 = vset.pattern.permute.xlu0 0
        %837 = vperm.xlu0 %836, %v833
        %v838 = vpop.permute.xlu0 %837
        %841 = vset.pattern.permute.xlu0 0
        %842 = vperm.xlu0 %841, %v834
        %v843 = vpop.permute.xlu0 %842
        %v846 = vsel %vm650, %v831, 0
        %v849 = vsel %vm650, %v832, 0
        %851 = vmatprep.subr.mxu0 0.0
        %852 = vmatpush1.msra.mxu0 0.0
        %853 = vmatprep.subr.mxu0 0.0
        %854 = vmatpush1.msra.mxu0 0.0
        %855 = vmatprep.subr.mxu0 0.0
        %856 = vmatpush1.msra.mxu0 0.0
        %857 = vmatprep.subr.mxu0 0.0
        %858 = vmatpush1.msra.mxu0 0.0
        %859 = vmatprep.subr.mxu0 0.0
        %860 = vmatpush1.msra.mxu0 0.0
        %861 = vmatprep.subr.mxu0 0.0
        %862 = vmatpush1.msra.mxu0 0.0
        %863 = vmatprep.subr.mxu0 0.0
        %864 = vmatpush1.msra.mxu0 0.0
        %865 = vmatprep.subr.mxu0 0.0
        %866 = vmatpush1.msra.mxu0 0.0
        %867 = vmatprep.subr.mxu0 0.0
        %868 = vmatpush1.msra.mxu0 0.0
        %869 = vmatprep.subr.mxu0 0.0
        %870 = vmatpush1.msra.mxu0 0.0
        %871 = vmatprep.subr.mxu0 0.0
        %872 = vmatpush1.msra.mxu0 0.0
        %873 = vmatprep.subr.mxu0 0.0
        %874 = vmatpush1.msra.mxu0 0.0
        %875 = vmatprep.subr.mxu0 0.0
        %876 = vmatpush1.msra.mxu0 0.0
        %877 = vmatprep.subr.mxu0 0.0
        %878 = vmatpush1.msra.mxu0 0.0
        %879 = vmatprep.subr.mxu0 %v830
        %880 = vmatpush1.msra.mxu0 %v829
        %881 = vmatprep.subr.mxu0 %v828
        %882 = vmatpush1.msra.mxu0 %v827
        %883 = vmatprep.subr.mxu0 0.0
        %884 = vmatpush2.msra.mxu0 0.0
        %885 = vmatprep.subr.mxu0 0.0
        %886 = vmatpush2.msra.mxu0 0.0
        %887 = vmatprep.subr.mxu0 0.0
        %888 = vmatpush2.msra.mxu0 0.0
        %889 = vmatprep.subr.mxu0 0.0
        %890 = vmatpush2.msra.mxu0 0.0
        %891 = vmatprep.subr.mxu0 0.0
        %892 = vmatpush2.msra.mxu0 0.0
        %893 = vmatprep.subr.mxu0 0.0
        %894 = vmatpush2.msra.mxu0 0.0
        %895 = vmatprep.subr.mxu0 0.0
        %896 = vmatpush2.msra.mxu0 0.0
        %897 = vmatprep.subr.mxu0 0.0
        %898 = vmatpush2.msra.mxu0 0.0
        %899 = vmatprep.subr.mxu0 0.0
        %900 = vmatpush2.msra.mxu0 0.0
        %901 = vmatprep.subr.mxu0 0.0
        %902 = vmatpush2.msra.mxu0 0.0
        %903 = vmatprep.subr.mxu0 0.0
        %904 = vmatpush2.msra.mxu0 0.0
        %905 = vmatprep.subr.mxu0 0.0
        %906 = vmatpush2.msra.mxu0 0.0
        %907 = vmatprep.subr.mxu0 0.0
        %908 = vmatpush2.msra.mxu0 0.0
        %909 = vmatprep.subr.mxu0 0.0
        %910 = vmatpush2.msra.mxu0 0.0
        %911 = vmatprep.subr.mxu0 0.0
        %912 = vmatpush2.msra.mxu0 0.0
        %913 = vmatprep.subr.mxu0 0.0
        %914 = vmatpush2.msra.mxu0 0.0
        %915 = vmatprep.mubr.f32.mxu0 0.0
        %916 = vmatmul.mubr.f32.gmra.mxu0 %v846
        %v917 = vpop.f32.mrf.mxu0
        %v918 = vadd.f32 %v838, %v917
        %v919 = vpop.f32.mrf.mxu0
        %v920 = vadd.f32 %v838, %v919
        %921 = vmatprep.mubr.f32.mxu0 0.0
        %922 = vmatmul.mubr.f32.gmra.mxu0 %v849
        %v923 = vpop.f32.mrf.mxu0
        %v924 = vadd.f32 %v843, %v923
        %v925 = vpop.f32.mrf.mxu0
        %v926 = vadd.f32 %v843, %v925
        %927 = vdwg.mxu0
        %v928 = vtanh.pop %v918
        %v929 = vtanh.pop %v920
        %v930 = vtanh.pop %v924
        %v931 = vtanh.pop %v926
        %v932 = vmul.f32 %v928, 0.5
        %v933 = vmul.f32 %v929, 0.5
        %v934 = vmul.f32 %v930, 0.5
        %v935 = vmul.f32 %v931, 0.5
        %v936 = vadd.f32 %v932, 0.5
        %v937 = vadd.f32 %v933, 0.5
        %v938 = vadd.f32 %v934, 0.5
        %v939 = vadd.f32 %v935, 0.5
        %v940 = vadd.f32 %v742, %v936
        %v941 = vadd.f32 %v743, %v937
        %v942 = vadd.f32 %v744, %v938
        %v943 = vadd.f32 %v745, %v939
        %944 = vst [vmem:[#allocation2 + $0x20] sm:$0xff] %v940
        %945 = vst [vmem:[#allocation2 + $0x28] sm:$0xff] %v941
        %946 = vst [vmem:[#allocation2 + $0x30] sm:$0xff] %v942
        %947 = vst [vmem:[#allocation2 + $0x38] sm:$0xff] %v943
        %s948 = scalar_lea.vmem %s4, 16
        %v949 = vld [vmem:[%s948] sm:$0xff]
        %v950 = vld [vmem:[%s948 + $0x8] sm:$0xff]
        %s951 = scalar_lea.vmem %s5, 16
        %v952 = vld [vmem:[%s951] sm:$0xff]
        %v953 = vld [vmem:[%s951 + $0x8] sm:$0xff]
        %v954 = vld [vmem:[#allocation3] sm:$0xff]
        %v955 = vld [vmem:[#allocation3 + $0x8] sm:$0xff]
        %v956 = vld [vmem:[#allocation3 + $0x10] sm:$0xff]
        %v957 = vld [vmem:[#allocation3 + $0x18] sm:$0xff]
        %v958 = vld [vmem:[#allocation3 + $0x20] sm:$0xff]
        %v959 = vld [vmem:[#allocation3 + $0x28] sm:$0xff]
        %v960 = vld [vmem:[#allocation3 + $0x30] sm:$0xff]
        %v961 = vld [vmem:[#allocation3 + $0x38] sm:$0xff]
        %v962 = vld [vmem:[#allocation3 + $0x40] sm:$0xff]
        %v963 = vld [vmem:[#allocation3 + $0x48] sm:$0xff]
        %v964 = vld [vmem:[#allocation3 + $0x50] sm:$0xff]
        %v965 = vld [vmem:[#allocation3 + $0x58] sm:$0xff]
        %v966 = vld [vmem:[#allocation3 + $0x60] sm:$0xff]
        %v967 = vld [vmem:[#allocation3 + $0x68] sm:$0xff]
        %v968 = vld [vmem:[#allocation3 + $0x70] sm:$0xff]
        %v969 = vld [vmem:[#allocation3 + $0x78] sm:$0xff]
        %v970 = vld [vmem:[#allocation3 + $0x80] sm:$0xff]
        %v971 = vld [vmem:[#allocation3 + $0x88] sm:$0xff]
        %v972 = vld [vmem:[#allocation3 + $0x90] sm:$0xff]
        %v973 = vld [vmem:[#allocation3 + $0x98] sm:$0xff]
        %v974 = vld [vmem:[#allocation3 + $0xa0] sm:$0xff]
        %v975 = vld [vmem:[#allocation3 + $0xa8] sm:$0xff]
        %v976 = vld [vmem:[#allocation3 + $0xb0] sm:$0xff]
        %v977 = vld [vmem:[#allocation3 + $0xb8] sm:$0xff]
        %v978 = vld [vmem:[#allocation3 + $0xc0] sm:$0xff]
        %v979 = vld [vmem:[#allocation3 + $0xc8] sm:$0xff]
        %v980 = vld [vmem:[#allocation3 + $0xd0] sm:$0xff]
        %v981 = vld [vmem:[#allocation3 + $0xd8] sm:$0xff]
        %v982 = vld [vmem:[#allocation3 + $0xe0] sm:$0xff]
        %v983 = vld [vmem:[#allocation3 + $0xe8] sm:$0xff]
        %v984 = vld [vmem:[#allocation3 + $0xf0] sm:$0xff]
        %v985 = vld [vmem:[#allocation3 + $0xf8] sm:$0xff]
        %v986 = vld [vmem:[#allocation3 + $0x100] sm:$0xff]
        %v987 = vld [vmem:[#allocation3 + $0x108] sm:$0xff]
        %v988 = vld [vmem:[#allocation3 + $0x110] sm:$0xff]
        %v989 = vld [vmem:[#allocation3 + $0x118] sm:$0xff]
        %v990 = vld [vmem:[#allocation3 + $0x120] sm:$0xff]
        %v991 = vld [vmem:[#allocation3 + $0x128] sm:$0xff]
        %v992 = vld [vmem:[#allocation3 + $0x130] sm:$0xff]
        %v993 = vld [vmem:[#allocation3 + $0x138] sm:$0xff]
        %v994 = vld [vmem:[#allocation3 + $0x140] sm:$0xff]
        %v995 = vld [vmem:[#allocation3 + $0x148] sm:$0xff]
        %v996 = vld [vmem:[#allocation3 + $0x150] sm:$0xff]
        %v997 = vld [vmem:[#allocation3 + $0x158] sm:$0xff]
        %v998 = vld [vmem:[#allocation3 + $0x160] sm:$0xff]
        %v999 = vld [vmem:[#allocation3 + $0x168] sm:$0xff]
        %v1000 = vld [vmem:[#allocation3 + $0x170] sm:$0xff]
        %v1001 = vld [vmem:[#allocation3 + $0x178] sm:$0xff]
        %v1002 = vld [vmem:[#allocation3 + $0x180] sm:$0xff]
        %v1003 = vld [vmem:[#allocation3 + $0x188] sm:$0xff]
        %v1004 = vld [vmem:[#allocation3 + $0x190] sm:$0xff]
        %v1005 = vld [vmem:[#allocation3 + $0x198] sm:$0xff]
        %v1006 = vld [vmem:[#allocation3 + $0x1a0] sm:$0xff]
        %v1007 = vld [vmem:[#allocation3 + $0x1a8] sm:$0xff]
        %v1008 = vld [vmem:[#allocation3 + $0x1b0] sm:$0xff]
        %v1009 = vld [vmem:[#allocation3 + $0x1b8] sm:$0xff]
        %v1010 = vld [vmem:[#allocation3 + $0x1c0] sm:$0xff]
        %v1011 = vld [vmem:[#allocation3 + $0x1c8] sm:$0xff]
        %v1012 = vld [vmem:[#allocation3 + $0x1d0] sm:$0xff]
        %v1013 = vld [vmem:[#allocation3 + $0x1d8] sm:$0xff]
        %v1014 = vld [vmem:[#allocation3 + $0x1e0] sm:$0xff]
        %v1015 = vld [vmem:[#allocation3 + $0x1e8] sm:$0xff]
        %v1016 = vld [vmem:[#allocation3 + $0x1f0] sm:$0xff]
        %v1017 = vld [vmem:[#allocation3 + $0x1f8] sm:$0xff]
        %1018 = vmatprep.subr.mxu0 %v985
        %1019 = vmatpush1.msra.mxu0 %v984
        %1020 = vmatprep.subr.mxu0 %v983
        %1021 = vmatpush1.msra.mxu0 %v982
        %1022 = vmatprep.subr.mxu0 %v981
        %1023 = vmatpush1.msra.mxu0 %v980
        %1024 = vmatprep.subr.mxu0 %v979
        %1025 = vmatpush1.msra.mxu0 %v978
        %1026 = vmatprep.subr.mxu0 %v977
        %1027 = vmatpush1.msra.mxu0 %v976
        %1028 = vmatprep.subr.mxu0 %v975
        %1029 = vmatpush1.msra.mxu0 %v974
        %1030 = vmatprep.subr.mxu0 %v973
        %1031 = vmatpush1.msra.mxu0 %v972
        %1032 = vmatprep.subr.mxu0 %v971
        %1033 = vmatpush1.msra.mxu0 %v970
        %1034 = vmatprep.subr.mxu0 %v969
        %1035 = vmatpush1.msra.mxu0 %v968
        %1036 = vmatprep.subr.mxu0 %v967
        %1037 = vmatpush1.msra.mxu0 %v966
        %1038 = vmatprep.subr.mxu0 %v965
        %1039 = vmatpush1.msra.mxu0 %v964
        %1040 = vmatprep.subr.mxu0 %v963
        %1041 = vmatpush1.msra.mxu0 %v962
        %1042 = vmatprep.subr.mxu0 %v961
        %1043 = vmatpush1.msra.mxu0 %v960
        %1044 = vmatprep.subr.mxu0 %v959
        %1045 = vmatpush1.msra.mxu0 %v958
        %1046 = vmatprep.subr.mxu0 %v957
        %1047 = vmatpush1.msra.mxu0 %v956
        %1048 = vmatprep.subr.mxu0 %v955
        %1049 = vmatpush1.msra.mxu0 %v954
        %1050 = vmatprep.subr.mxu0 %v1017
        %1051 = vmatpush2.msra.mxu0 %v1016
        %1052 = vmatprep.subr.mxu0 %v1015
        %1053 = vmatpush2.msra.mxu0 %v1014
        %1054 = vmatprep.subr.mxu0 %v1013
        %1055 = vmatpush2.msra.mxu0 %v1012
        %1056 = vmatprep.subr.mxu0 %v1011
        %1057 = vmatpush2.msra.mxu0 %v1010
        %1058 = vmatprep.subr.mxu0 %v1009
        %1059 = vmatpush2.msra.mxu0 %v1008
        %1060 = vmatprep.subr.mxu0 %v1007
        %1061 = vmatpush2.msra.mxu0 %v1006
        %1062 = vmatprep.subr.mxu0 %v1005
        %1063 = vmatpush2.msra.mxu0 %v1004
        %1064 = vmatprep.subr.mxu0 %v1003
        %1065 = vmatpush2.msra.mxu0 %v1002
        %1066 = vmatprep.subr.mxu0 %v1001
        %1067 = vmatpush2.msra.mxu0 %v1000
        %1068 = vmatprep.subr.mxu0 %v999
        %1069 = vmatpush2.msra.mxu0 %v998
        %1070 = vmatprep.subr.mxu0 %v997
        %1071 = vmatpush2.msra.mxu0 %v996
        %1072 = vmatprep.subr.mxu0 %v995
        %1073 = vmatpush2.msra.mxu0 %v994
        %1074 = vmatprep.subr.mxu0 %v993
        %1075 = vmatpush2.msra.mxu0 %v992
        %1076 = vmatprep.subr.mxu0 %v991
        %1077 = vmatpush2.msra.mxu0 %v990
        %1078 = vmatprep.subr.mxu0 %v989
        %1079 = vmatpush2.msra.mxu0 %v988
        %1080 = vmatprep.subr.mxu0 %v987
        %1081 = vmatpush2.msra.mxu0 %v986
        %1082 = vmatprep.mubr.f32.mxu0 %v743
        %1083 = vmatmul.mubr.f32.gmra.mxu0 %v742
        %v1084 = vpop.f32.mrf.mxu0
        %v1085 = vadd.f32 0.0, %v1084
        %v1086 = vpop.f32.mrf.mxu0
        %v1087 = vadd.f32 0.0, %v1086
        %1088 = vmatprep.mubr.f32.mxu0 %v745
        %1089 = vmatmul.mubr.f32.gmra.mxu0 %v744
        %v1090 = vpop.f32.mrf.mxu0
        %v1091 = vadd.f32 0.0, %v1090
        %v1092 = vpop.f32.mrf.mxu0
        %v1093 = vadd.f32 0.0, %v1092
        %1094 = vdwg.mxu0
        %1096 = vset.pattern.permute.xlu0 0
        %1097 = vperm.xlu0 %1096, %v952
        %v1098 = vpop.permute.xlu0 %1097
        %1101 = vset.pattern.permute.xlu0 0
        %1102 = vperm.xlu0 %1101, %v953
        %v1103 = vpop.permute.xlu0 %1102
        %v1106 = vsel %vm650, %v949, 0
        %v1109 = vsel %vm650, %v950, 0
        %1111 = vmatprep.subr.mxu0 0.0
        %1112 = vmatpush1.msra.mxu0 0.0
        %1113 = vmatprep.subr.mxu0 0.0
        %1114 = vmatpush1.msra.mxu0 0.0
        %1115 = vmatprep.subr.mxu0 0.0
        %1116 = vmatpush1.msra.mxu0 0.0
        %1117 = vmatprep.subr.mxu0 0.0
        %1118 = vmatpush1.msra.mxu0 0.0
        %1119 = vmatprep.subr.mxu0 0.0
        %1120 = vmatpush1.msra.mxu0 0.0
        %1121 = vmatprep.subr.mxu0 0.0
        %1122 = vmatpush1.msra.mxu0 0.0
        %1123 = vmatprep.subr.mxu0 0.0
        %1124 = vmatpush1.msra.mxu0 0.0
        %1125 = vmatprep.subr.mxu0 0.0
        %1126 = vmatpush1.msra.mxu0 0.0
        %1127 = vmatprep.subr.mxu0 0.0
        %1128 = vmatpush1.msra.mxu0 0.0
        %1129 = vmatprep.subr.mxu0 0.0
        %1130 = vmatpush1.msra.mxu0 0.0
        %1131 = vmatprep.subr.mxu0 0.0
        %1132 = vmatpush1.msra.mxu0 0.0
        %1133 = vmatprep.subr.mxu0 0.0
        %1134 = vmatpush1.msra.mxu0 0.0
        %1135 = vmatprep.subr.mxu0 0.0
        %1136 = vmatpush1.msra.mxu0 0.0
        %1137 = vmatprep.subr.mxu0 0.0
        %1138 = vmatpush1.msra.mxu0 0.0
        %1139 = vmatprep.subr.mxu0 %v1093
        %1140 = vmatpush1.msra.mxu0 %v1091
        %1141 = vmatprep.subr.mxu0 %v1087
        %1142 = vmatpush1.msra.mxu0 %v1085
        %1143 = vmatprep.subr.mxu0 0.0
        %1144 = vmatpush2.msra.mxu0 0.0
        %1145 = vmatprep.subr.mxu0 0.0
        %1146 = vmatpush2.msra.mxu0 0.0
        %1147 = vmatprep.subr.mxu0 0.0
        %1148 = vmatpush2.msra.mxu0 0.0
        %1149 = vmatprep.subr.mxu0 0.0
        %1150 = vmatpush2.msra.mxu0 0.0
        %1151 = vmatprep.subr.mxu0 0.0
        %1152 = vmatpush2.msra.mxu0 0.0
        %1153 = vmatprep.subr.mxu0 0.0
        %1154 = vmatpush2.msra.mxu0 0.0
        %1155 = vmatprep.subr.mxu0 0.0
        %1156 = vmatpush2.msra.mxu0 0.0
        %1157 = vmatprep.subr.mxu0 0.0
        %1158 = vmatpush2.msra.mxu0 0.0
        %1159 = vmatprep.subr.mxu0 0.0
        %1160 = vmatpush2.msra.mxu0 0.0
        %1161 = vmatprep.subr.mxu0 0.0
        %1162 = vmatpush2.msra.mxu0 0.0
        %1163 = vmatprep.subr.mxu0 0.0
        %1164 = vmatpush2.msra.mxu0 0.0
        %1165 = vmatprep.subr.mxu0 0.0
        %1166 = vmatpush2.msra.mxu0 0.0
        %1167 = vmatprep.subr.mxu0 0.0
        %1168 = vmatpush2.msra.mxu0 0.0
        %1169 = vmatprep.subr.mxu0 0.0
        %1170 = vmatpush2.msra.mxu0 0.0
        %1171 = vmatprep.subr.mxu0 0.0
        %1172 = vmatpush2.msra.mxu0 0.0
        %1173 = vmatprep.subr.mxu0 0.0
        %1174 = vmatpush2.msra.mxu0 0.0
        %1175 = vmatprep.mubr.f32.mxu0 0.0
        %1176 = vmatmul.mubr.f32.gmra.mxu0 %v1106
        %v1177 = vpop.f32.mrf.mxu0
        %v1178 = vadd.f32 %v1098, %v1177
        %v1179 = vpop.f32.mrf.mxu0
        %v1180 = vadd.f32 %v1098, %v1179
        %1181 = vmatprep.mubr.f32.mxu0 0.0
        %1182 = vmatmul.mubr.f32.gmra.mxu0 %v1109
        %v1183 = vpop.f32.mrf.mxu0
        %v1184 = vadd.f32 %v1103, %v1183
        %v1185 = vpop.f32.mrf.mxu0
        %v1186 = vadd.f32 %v1103, %v1185
        %1187 = vdwg.mxu0
        %v1188 = vtanh.pop %v1178
        %v1189 = vtanh.pop %v1180
        %v1190 = vtanh.pop %v1184
        %v1191 = vtanh.pop %v1186
        %v1192 = vmul.f32 %v1188, 0.5
        %v1193 = vmul.f32 %v1189, 0.5
        %v1194 = vmul.f32 %v1190, 0.5
        %v1195 = vmul.f32 %v1191, 0.5
        %v1196 = vadd.f32 %v1192, 0.5
        %v1197 = vadd.f32 %v1193, 0.5
        %v1198 = vadd.f32 %v1194, 0.5
        %v1199 = vadd.f32 %v1195, 0.5
        %1200 = vmatprep.subr.mxu0 %v985
        %1201 = vmatpush1.msra.mxu0 %v984
        %1202 = vmatprep.subr.mxu0 %v983
        %1203 = vmatpush1.msra.mxu0 %v982
        %1204 = vmatprep.subr.mxu0 %v981
        %1205 = vmatpush1.msra.mxu0 %v980
        %1206 = vmatprep.subr.mxu0 %v979
        %1207 = vmatpush1.msra.mxu0 %v978
        %1208 = vmatprep.subr.mxu0 %v977
        %1209 = vmatpush1.msra.mxu0 %v976
        %1210 = vmatprep.subr.mxu0 %v975
        %1211 = vmatpush1.msra.mxu0 %v974
        %1212 = vmatprep.subr.mxu0 %v973
        %1213 = vmatpush1.msra.mxu0 %v972
        %1214 = vmatprep.subr.mxu0 %v971
        %1215 = vmatpush1.msra.mxu0 %v970
        %1216 = vmatprep.subr.mxu0 %v969
        %1217 = vmatpush1.msra.mxu0 %v968
        %1218 = vmatprep.subr.mxu0 %v967
        %1219 = vmatpush1.msra.mxu0 %v966
        %1220 = vmatprep.subr.mxu0 %v965
        %1221 = vmatpush1.msra.mxu0 %v964
        %1222 = vmatprep.subr.mxu0 %v963
        %1223 = vmatpush1.msra.mxu0 %v962
        %1224 = vmatprep.subr.mxu0 %v961
        %1225 = vmatpush1.msra.mxu0 %v960
        %1226 = vmatprep.subr.mxu0 %v959
        %1227 = vmatpush1.msra.mxu0 %v958
        %1228 = vmatprep.subr.mxu0 %v957
        %1229 = vmatpush1.msra.mxu0 %v956
        %1230 = vmatprep.subr.mxu0 %v955
        %1231 = vmatpush1.msra.mxu0 %v954
        %1232 = vmatprep.subr.mxu0 %v1017
        %1233 = vmatpush2.msra.mxu0 %v1016
        %1234 = vmatprep.subr.mxu0 %v1015
        %1235 = vmatpush2.msra.mxu0 %v1014
        %1236 = vmatprep.subr.mxu0 %v1013
        %1237 = vmatpush2.msra.mxu0 %v1012
        %1238 = vmatprep.subr.mxu0 %v1011
        %1239 = vmatpush2.msra.mxu0 %v1010
        %1240 = vmatprep.subr.mxu0 %v1009
        %1241 = vmatpush2.msra.mxu0 %v1008
        %1242 = vmatprep.subr.mxu0 %v1007
        %1243 = vmatpush2.msra.mxu0 %v1006
        %1244 = vmatprep.subr.mxu0 %v1005
        %1245 = vmatpush2.msra.mxu0 %v1004
        %1246 = vmatprep.subr.mxu0 %v1003
        %1247 = vmatpush2.msra.mxu0 %v1002
        %1248 = vmatprep.subr.mxu0 %v1001
        %1249 = vmatpush2.msra.mxu0 %v1000
        %1250 = vmatprep.subr.mxu0 %v999
        %1251 = vmatpush2.msra.mxu0 %v998
        %1252 = vmatprep.subr.mxu0 %v997
        %1253 = vmatpush2.msra.mxu0 %v996
        %1254 = vmatprep.subr.mxu0 %v995
        %1255 = vmatpush2.msra.mxu0 %v994
        %1256 = vmatprep.subr.mxu0 %v993
        %1257 = vmatpush2.msra.mxu0 %v992
        %1258 = vmatprep.subr.mxu0 %v991
        %1259 = vmatpush2.msra.mxu0 %v990
        %1260 = vmatprep.subr.mxu0 %v989
        %1261 = vmatpush2.msra.mxu0 %v988
        %1262 = vmatprep.subr.mxu0 %v987
        %1263 = vmatpush2.msra.mxu0 %v986
        %1264 = vmatprep.mubr.f32.mxu0 %v1197
        %1265 = vmatmul.mubr.f32.gmra.mxu0 %v1196
        %v1266 = vpop.f32.mrf.mxu0
        %v1267 = vadd.f32 0.0, %v1266
        %v1268 = vpop.f32.mrf.mxu0
        %v1269 = vadd.f32 0.0, %v1268
        %1270 = vmatprep.mubr.f32.mxu0 %v1199
        %1271 = vmatmul.mubr.f32.gmra.mxu0 %v1198
        %v1272 = vpop.f32.mrf.mxu0
        %v1273 = vadd.f32 0.0, %v1272
        %v1274 = vpop.f32.mrf.mxu0
        %v1275 = vadd.f32 0.0, %v1274
        %1276 = vdwg.mxu0
        %v1277 = vmul.f32 %v1267, 0.11111111
        %v1278 = vmul.f32 %v1269, 0.11111111
        %v1279 = vmul.f32 %v1273, 0.11111111
        %v1280 = vmul.f32 %v1275, 0.11111111
        %v1281 = vsub.f32 %v1196, %v1277
        %v1282 = vsub.f32 %v1197, %v1278
        %v1283 = vsub.f32 %v1198, %v1279
        %v1284 = vsub.f32 %v1199, %v1280
        %s1285 = scalar_lea.vmem %s6, 16
        %v1286 = vld [vmem:[%s1285] sm:$0xff]
        %v1287 = vld [vmem:[%s1285 + $0x8] sm:$0xff]
        %s1288 = scalar_lea.vmem %s7, 16
        %v1289 = vld [vmem:[%s1288] sm:$0xff]
        %v1290 = vld [vmem:[%s1288 + $0x8] sm:$0xff]
        %1292 = vset.pattern.permute.xlu0 0
        %1293 = vperm.xlu0 %1292, %v1289
        %v1294 = vpop.permute.xlu0 %1293
        %1297 = vset.pattern.permute.xlu0 0
        %1298 = vperm.xlu0 %1297, %v1290
        %v1299 = vpop.permute.xlu0 %1298
        %v1302 = vsel %vm650, %v1286, 0
        %v1305 = vsel %vm650, %v1287, 0
        %1307 = vmatprep.subr.mxu0 0.0
        %1308 = vmatpush1.msra.mxu0 0.0
        %1309 = vmatprep.subr.mxu0 0.0
        %1310 = vmatpush1.msra.mxu0 0.0
        %1311 = vmatprep.subr.mxu0 0.0
        %1312 = vmatpush1.msra.mxu0 0.0
        %1313 = vmatprep.subr.mxu0 0.0
        %1314 = vmatpush1.msra.mxu0 0.0
        %1315 = vmatprep.subr.mxu0 0.0
        %1316 = vmatpush1.msra.mxu0 0.0
        %1317 = vmatprep.subr.mxu0 0.0
        %1318 = vmatpush1.msra.mxu0 0.0
        %1319 = vmatprep.subr.mxu0 0.0
        %1320 = vmatpush1.msra.mxu0 0.0
        %1321 = vmatprep.subr.mxu0 0.0
        %1322 = vmatpush1.msra.mxu0 0.0
        %1323 = vmatprep.subr.mxu0 0.0
        %1324 = vmatpush1.msra.mxu0 0.0
        %1325 = vmatprep.subr.mxu0 0.0
        %1326 = vmatpush1.msra.mxu0 0.0
        %1327 = vmatprep.subr.mxu0 0.0
        %1328 = vmatpush1.msra.mxu0 0.0
        %1329 = vmatprep.subr.mxu0 0.0
        %1330 = vmatpush1.msra.mxu0 0.0
        %1331 = vmatprep.subr.mxu0 0.0
        %1332 = vmatpush1.msra.mxu0 0.0
        %1333 = vmatprep.subr.mxu0 0.0
        %1334 = vmatpush1.msra.mxu0 0.0
        %1335 = vmatprep.subr.mxu0 %v1284
        %1336 = vmatpush1.msra.mxu0 %v1283
        %1337 = vmatprep.subr.mxu0 %v1282
        %1338 = vmatpush1.msra.mxu0 %v1281
        %1339 = vmatprep.subr.mxu0 0.0
        %1340 = vmatpush2.msra.mxu0 0.0
        %1341 = vmatprep.subr.mxu0 0.0
        %1342 = vmatpush2.msra.mxu0 0.0
        %1343 = vmatprep.subr.mxu0 0.0
        %1344 = vmatpush2.msra.mxu0 0.0
        %1345 = vmatprep.subr.mxu0 0.0
        %1346 = vmatpush2.msra.mxu0 0.0
        %1347 = vmatprep.subr.mxu0 0.0
        %1348 = vmatpush2.msra.mxu0 0.0
        %1349 = vmatprep.subr.mxu0 0.0
        %1350 = vmatpush2.msra.mxu0 0.0
        %1351 = vmatprep.subr.mxu0 0.0
        %1352 = vmatpush2.msra.mxu0 0.0
        %1353 = vmatprep.subr.mxu0 0.0
        %1354 = vmatpush2.msra.mxu0 0.0
        %1355 = vmatprep.subr.mxu0 0.0
        %1356 = vmatpush2.msra.mxu0 0.0
        %1357 = vmatprep.subr.mxu0 0.0
        %1358 = vmatpush2.msra.mxu0 0.0
        %1359 = vmatprep.subr.mxu0 0.0
        %1360 = vmatpush2.msra.mxu0 0.0
        %1361 = vmatprep.subr.mxu0 0.0
        %1362 = vmatpush2.msra.mxu0 0.0
        %1363 = vmatprep.subr.mxu0 0.0
        %1364 = vmatpush2.msra.mxu0 0.0
        %1365 = vmatprep.subr.mxu0 0.0
        %1366 = vmatpush2.msra.mxu0 0.0
        %1367 = vmatprep.subr.mxu0 0.0
        %1368 = vmatpush2.msra.mxu0 0.0
        %1369 = vmatprep.subr.mxu0 0.0
        %1370 = vmatpush2.msra.mxu0 0.0
        %1371 = vmatprep.mubr.f32.mxu0 0.0
        %1372 = vmatmul.mubr.f32.gmra.mxu0 %v1302
        %v1373 = vpop.f32.mrf.mxu0
        %v1374 = vadd.f32 %v1294, %v1373
        %v1375 = vpop.f32.mrf.mxu0
        %v1376 = vadd.f32 %v1294, %v1375
        %1377 = vmatprep.mubr.f32.mxu0 0.0
        %1378 = vmatmul.mubr.f32.gmra.mxu0 %v1305
        %v1379 = vpop.f32.mrf.mxu0
        %v1380 = vadd.f32 %v1299, %v1379
        %v1381 = vpop.f32.mrf.mxu0
        %v1382 = vadd.f32 %v1299, %v1381
        %1383 = vdwg.mxu0
        %v1384 = vtanh.pop %v1374
        %v1385 = vtanh.pop %v1376
        %v1386 = vtanh.pop %v1380
        %v1387 = vtanh.pop %v1382
        %v1388 = vmul.f32 %v1384, 0.5
        %v1389 = vmul.f32 %v1385, 0.5
        %v1390 = vmul.f32 %v1386, 0.5
        %v1391 = vmul.f32 %v1387, 0.5
        %v1392 = vadd.f32 %v1388, 0.5
        %v1393 = vadd.f32 %v1389, 0.5
        %v1394 = vadd.f32 %v1390, 0.5
        %v1395 = vadd.f32 %v1391, 0.5
        %v1396 = vadd.f32 %v1196, %v1392
        %v1397 = vadd.f32 %v1197, %v1393
        %v1398 = vadd.f32 %v1198, %v1394
        %v1399 = vadd.f32 %v1199, %v1395
        %1400 = vst [vmem:[#allocation2 + $0x40] sm:$0xff] %v1396
        %1401 = vst [vmem:[#allocation2 + $0x48] sm:$0xff] %v1397
        %1402 = vst [vmem:[#allocation2 + $0x50] sm:$0xff] %v1398
        %1403 = vst [vmem:[#allocation2 + $0x58] sm:$0xff] %v1399
        %s1404 = scalar_lea.vmem %s4, 32
        %v1405 = vld [vmem:[%s1404] sm:$0xff]
        %v1406 = vld [vmem:[%s1404 + $0x8] sm:$0xff]
        %s1407 = scalar_lea.vmem %s5, 32
        %v1408 = vld [vmem:[%s1407] sm:$0xff]
        %v1409 = vld [vmem:[%s1407 + $0x8] sm:$0xff]
        %v1410 = vld [vmem:[#allocation3] sm:$0xff]
        %v1411 = vld [vmem:[#allocation3 + $0x8] sm:$0xff]
        %v1412 = vld [vmem:[#allocation3 + $0x10] sm:$0xff]
        %v1413 = vld [vmem:[#allocation3 + $0x18] sm:$0xff]
        %v1414 = vld [vmem:[#allocation3 + $0x20] sm:$0xff]
        %v1415 = vld [vmem:[#allocation3 + $0x28] sm:$0xff]
        %v1416 = vld [vmem:[#allocation3 + $0x30] sm:$0xff]
        %v1417 = vld [vmem:[#allocation3 + $0x38] sm:$0xff]
        %v1418 = vld [vmem:[#allocation3 + $0x40] sm:$0xff]
        %v1419 = vld [vmem:[#allocation3 + $0x48] sm:$0xff]
        %v1420 = vld [vmem:[#allocation3 + $0x50] sm:$0xff]
        %v1421 = vld [vmem:[#allocation3 + $0x58] sm:$0xff]
        %v1422 = vld [vmem:[#allocation3 + $0x60] sm:$0xff]
        %v1423 = vld [vmem:[#allocation3 + $0x68] sm:$0xff]
        %v1424 = vld [vmem:[#allocation3 + $0x70] sm:$0xff]
        %v1425 = vld [vmem:[#allocation3 + $0x78] sm:$0xff]
        %v1426 = vld [vmem:[#allocation3 + $0x80] sm:$0xff]
        %v1427 = vld [vmem:[#allocation3 + $0x88] sm:$0xff]
        %v1428 = vld [vmem:[#allocation3 + $0x90] sm:$0xff]
        %v1429 = vld [vmem:[#allocation3 + $0x98] sm:$0xff]
        %v1430 = vld [vmem:[#allocation3 + $0xa0] sm:$0xff]
        %v1431 = vld [vmem:[#allocation3 + $0xa8] sm:$0xff]
        %v1432 = vld [vmem:[#allocation3 + $0xb0] sm:$0xff]
        %v1433 = vld [vmem:[#allocation3 + $0xb8] sm:$0xff]
        %v1434 = vld [vmem:[#allocation3 + $0xc0] sm:$0xff]
        %v1435 = vld [vmem:[#allocation3 + $0xc8] sm:$0xff]
        %v1436 = vld [vmem:[#allocation3 + $0xd0] sm:$0xff]
        %v1437 = vld [vmem:[#allocation3 + $0xd8] sm:$0xff]
        %v1438 = vld [vmem:[#allocation3 + $0xe0] sm:$0xff]
        %v1439 = vld [vmem:[#allocation3 + $0xe8] sm:$0xff]
        %v1440 = vld [vmem:[#allocation3 + $0xf0] sm:$0xff]
        %v1441 = vld [vmem:[#allocation3 + $0xf8] sm:$0xff]
        %v1442 = vld [vmem:[#allocation3 + $0x100] sm:$0xff]
        %v1443 = vld [vmem:[#allocation3 + $0x108] sm:$0xff]
        %v1444 = vld [vmem:[#allocation3 + $0x110] sm:$0xff]
        %v1445 = vld [vmem:[#allocation3 + $0x118] sm:$0xff]
        %v1446 = vld [vmem:[#allocation3 + $0x120] sm:$0xff]
        %v1447 = vld [vmem:[#allocation3 + $0x128] sm:$0xff]
        %v1448 = vld [vmem:[#allocation3 + $0x130] sm:$0xff]
        %v1449 = vld [vmem:[#allocation3 + $0x138] sm:$0xff]
        %v1450 = vld [vmem:[#allocation3 + $0x140] sm:$0xff]
        %v1451 = vld [vmem:[#allocation3 + $0x148] sm:$0xff]
        %v1452 = vld [vmem:[#allocation3 + $0x150] sm:$0xff]
        %v1453 = vld [vmem:[#allocation3 + $0x158] sm:$0xff]
        %v1454 = vld [vmem:[#allocation3 + $0x160] sm:$0xff]
        %v1455 = vld [vmem:[#allocation3 + $0x168] sm:$0xff]
        %v1456 = vld [vmem:[#allocation3 + $0x170] sm:$0xff]
        %v1457 = vld [vmem:[#allocation3 + $0x178] sm:$0xff]
        %v1458 = vld [vmem:[#allocation3 + $0x180] sm:$0xff]
        %v1459 = vld [vmem:[#allocation3 + $0x188] sm:$0xff]
        %v1460 = vld [vmem:[#allocation3 + $0x190] sm:$0xff]
        %v1461 = vld [vmem:[#allocation3 + $0x198] sm:$0xff]
        %v1462 = vld [vmem:[#allocation3 + $0x1a0] sm:$0xff]
        %v1463 = vld [vmem:[#allocation3 + $0x1a8] sm:$0xff]
        %v1464 = vld [vmem:[#allocation3 + $0x1b0] sm:$0xff]
        %v1465 = vld [vmem:[#allocation3 + $0x1b8] sm:$0xff]
        %v1466 = vld [vmem:[#allocation3 + $0x1c0] sm:$0xff]
        %v1467 = vld [vmem:[#allocation3 + $0x1c8] sm:$0xff]
        %v1468 = vld [vmem:[#allocation3 + $0x1d0] sm:$0xff]
        %v1469 = vld [vmem:[#allocation3 + $0x1d8] sm:$0xff]
        %v1470 = vld [vmem:[#allocation3 + $0x1e0] sm:$0xff]
        %v1471 = vld [vmem:[#allocation3 + $0x1e8] sm:$0xff]
        %v1472 = vld [vmem:[#allocation3 + $0x1f0] sm:$0xff]
        %v1473 = vld [vmem:[#allocation3 + $0x1f8] sm:$0xff]
        %1474 = vmatprep.subr.mxu0 %v1441
        %1475 = vmatpush1.msra.mxu0 %v1440
        %1476 = vmatprep.subr.mxu0 %v1439
        %1477 = vmatpush1.msra.mxu0 %v1438
        %1478 = vmatprep.subr.mxu0 %v1437
        %1479 = vmatpush1.msra.mxu0 %v1436
        %1480 = vmatprep.subr.mxu0 %v1435
        %1481 = vmatpush1.msra.mxu0 %v1434
        %1482 = vmatprep.subr.mxu0 %v1433
        %1483 = vmatpush1.msra.mxu0 %v1432
        %1484 = vmatprep.subr.mxu0 %v1431
        %1485 = vmatpush1.msra.mxu0 %v1430
        %1486 = vmatprep.subr.mxu0 %v1429
        %1487 = vmatpush1.msra.mxu0 %v1428
        %1488 = vmatprep.subr.mxu0 %v1427
        %1489 = vmatpush1.msra.mxu0 %v1426
        %1490 = vmatprep.subr.mxu0 %v1425
        %1491 = vmatpush1.msra.mxu0 %v1424
        %1492 = vmatprep.subr.mxu0 %v1423
        %1493 = vmatpush1.msra.mxu0 %v1422
        %1494 = vmatprep.subr.mxu0 %v1421
        %1495 = vmatpush1.msra.mxu0 %v1420
        %1496 = vmatprep.subr.mxu0 %v1419
        %1497 = vmatpush1.msra.mxu0 %v1418
        %1498 = vmatprep.subr.mxu0 %v1417
        %1499 = vmatpush1.msra.mxu0 %v1416
        %1500 = vmatprep.subr.mxu0 %v1415
        %1501 = vmatpush1.msra.mxu0 %v1414
        %1502 = vmatprep.subr.mxu0 %v1413
        %1503 = vmatpush1.msra.mxu0 %v1412
        %1504 = vmatprep.subr.mxu0 %v1411
        %1505 = vmatpush1.msra.mxu0 %v1410
        %1506 = vmatprep.subr.mxu0 %v1473
        %1507 = vmatpush2.msra.mxu0 %v1472
        %1508 = vmatprep.subr.mxu0 %v1471
        %1509 = vmatpush2.msra.mxu0 %v1470
        %1510 = vmatprep.subr.mxu0 %v1469
        %1511 = vmatpush2.msra.mxu0 %v1468
        %1512 = vmatprep.subr.mxu0 %v1467
        %1513 = vmatpush2.msra.mxu0 %v1466
        %1514 = vmatprep.subr.mxu0 %v1465
        %1515 = vmatpush2.msra.mxu0 %v1464
        %1516 = vmatprep.subr.mxu0 %v1463
        %1517 = vmatpush2.msra.mxu0 %v1462
        %1518 = vmatprep.subr.mxu0 %v1461
        %1519 = vmatpush2.msra.mxu0 %v1460
        %1520 = vmatprep.subr.mxu0 %v1459
        %1521 = vmatpush2.msra.mxu0 %v1458
        %1522 = vmatprep.subr.mxu0 %v1457
        %1523 = vmatpush2.msra.mxu0 %v1456
        %1524 = vmatprep.subr.mxu0 %v1455
        %1525 = vmatpush2.msra.mxu0 %v1454
        %1526 = vmatprep.subr.mxu0 %v1453
        %1527 = vmatpush2.msra.mxu0 %v1452
        %1528 = vmatprep.subr.mxu0 %v1451
        %1529 = vmatpush2.msra.mxu0 %v1450
        %1530 = vmatprep.subr.mxu0 %v1449
        %1531 = vmatpush2.msra.mxu0 %v1448
        %1532 = vmatprep.subr.mxu0 %v1447
        %1533 = vmatpush2.msra.mxu0 %v1446
        %1534 = vmatprep.subr.mxu0 %v1445
        %1535 = vmatpush2.msra.mxu0 %v1444
        %1536 = vmatprep.subr.mxu0 %v1443
        %1537 = vmatpush2.msra.mxu0 %v1442
        %1538 = vmatprep.mubr.f32.mxu0 %v1197
        %1539 = vmatmul.mubr.f32.gmra.mxu0 %v1196
        %v1540 = vpop.f32.mrf.mxu0
        %v1541 = vadd.f32 0.0, %v1540
        %v1542 = vpop.f32.mrf.mxu0
        %v1543 = vadd.f32 0.0, %v1542
        %1544 = vmatprep.mubr.f32.mxu0 %v1199
        %1545 = vmatmul.mubr.f32.gmra.mxu0 %v1198
        %v1546 = vpop.f32.mrf.mxu0
        %v1547 = vadd.f32 0.0, %v1546
        %v1548 = vpop.f32.mrf.mxu0
        %v1549 = vadd.f32 0.0, %v1548
        %1550 = vdwg.mxu0
        %1552 = vset.pattern.permute.xlu0 0
        %1553 = vperm.xlu0 %1552, %v1408
        %v1554 = vpop.permute.xlu0 %1553
        %1557 = vset.pattern.permute.xlu0 0
        %1558 = vperm.xlu0 %1557, %v1409
        %v1559 = vpop.permute.xlu0 %1558
        %v1562 = vsel %vm650, %v1405, 0
        %v1565 = vsel %vm650, %v1406, 0
        %1567 = vmatprep.subr.mxu0 0.0
        %1568 = vmatpush1.msra.mxu0 0.0
        %1569 = vmatprep.subr.mxu0 0.0
        %1570 = vmatpush1.msra.mxu0 0.0
        %1571 = vmatprep.subr.mxu0 0.0
        %1572 = vmatpush1.msra.mxu0 0.0
        %1573 = vmatprep.subr.mxu0 0.0
        %1574 = vmatpush1.msra.mxu0 0.0
        %1575 = vmatprep.subr.mxu0 0.0
        %1576 = vmatpush1.msra.mxu0 0.0
        %1577 = vmatprep.subr.mxu0 0.0
        %1578 = vmatpush1.msra.mxu0 0.0
        %1579 = vmatprep.subr.mxu0 0.0
        %1580 = vmatpush1.msra.mxu0 0.0
        %1581 = vmatprep.subr.mxu0 0.0
        %1582 = vmatpush1.msra.mxu0 0.0
        %1583 = vmatprep.subr.mxu0 0.0
        %1584 = vmatpush1.msra.mxu0 0.0
        %1585 = vmatprep.subr.mxu0 0.0
        %1586 = vmatpush1.msra.mxu0 0.0
        %1587 = vmatprep.subr.mxu0 0.0
        %1588 = vmatpush1.msra.mxu0 0.0
        %1589 = vmatprep.subr.mxu0 0.0
        %1590 = vmatpush1.msra.mxu0 0.0
        %1591 = vmatprep.subr.mxu0 0.0
        %1592 = vmatpush1.msra.mxu0 0.0
        %1593 = vmatprep.subr.mxu0 0.0
        %1594 = vmatpush1.msra.mxu0 0.0
        %1595 = vmatprep.subr.mxu0 %v1549
        %1596 = vmatpush1.msra.mxu0 %v1547
        %1597 = vmatprep.subr.mxu0 %v1543
        %1598 = vmatpush1.msra.mxu0 %v1541
        %1599 = vmatprep.subr.mxu0 0.0
        %1600 = vmatpush2.msra.mxu0 0.0
        %1601 = vmatprep.subr.mxu0 0.0
        %1602 = vmatpush2.msra.mxu0 0.0
        %1603 = vmatprep.subr.mxu0 0.0
        %1604 = vmatpush2.msra.mxu0 0.0
        %1605 = vmatprep.subr.mxu0 0.0
        %1606 = vmatpush2.msra.mxu0 0.0
        %1607 = vmatprep.subr.mxu0 0.0
        %1608 = vmatpush2.msra.mxu0 0.0
        %1609 = vmatprep.subr.mxu0 0.0
        %1610 = vmatpush2.msra.mxu0 0.0
        %1611 = vmatprep.subr.mxu0 0.0
        %1612 = vmatpush2.msra.mxu0 0.0
        %1613 = vmatprep.subr.mxu0 0.0
        %1614 = vmatpush2.msra.mxu0 0.0
        %1615 = vmatprep.subr.mxu0 0.0
        %1616 = vmatpush2.msra.mxu0 0.0
        %1617 = vmatprep.subr.mxu0 0.0
        %1618 = vmatpush2.msra.mxu0 0.0
        %1619 = vmatprep.subr.mxu0 0.0
        %1620 = vmatpush2.msra.mxu0 0.0
        %1621 = vmatprep.subr.mxu0 0.0
        %1622 = vmatpush2.msra.mxu0 0.0
        %1623 = vmatprep.subr.mxu0 0.0
        %1624 = vmatpush2.msra.mxu0 0.0
        %1625 = vmatprep.subr.mxu0 0.0
        %1626 = vmatpush2.msra.mxu0 0.0
        %1627 = vmatprep.subr.mxu0 0.0
        %1628 = vmatpush2.msra.mxu0 0.0
        %1629 = vmatprep.subr.mxu0 0.0
        %1630 = vmatpush2.msra.mxu0 0.0
        %1631 = vmatprep.mubr.f32.mxu0 0.0
        %1632 = vmatmul.mubr.f32.gmra.mxu0 %v1562
        %v1633 = vpop.f32.mrf.mxu0
        %v1634 = vadd.f32 %v1554, %v1633
        %v1635 = vpop.f32.mrf.mxu0
        %v1636 = vadd.f32 %v1554, %v1635
        %1637 = vmatprep.mubr.f32.mxu0 0.0
        %1638 = vmatmul.mubr.f32.gmra.mxu0 %v1565
        %v1639 = vpop.f32.mrf.mxu0
        %v1640 = vadd.f32 %v1559, %v1639
        %v1641 = vpop.f32.mrf.mxu0
        %v1642 = vadd.f32 %v1559, %v1641
        %1643 = vdwg.mxu0
        %v1644 = vtanh.pop %v1634
        %v1645 = vtanh.pop %v1636
        %v1646 = vtanh.pop %v1640
        %v1647 = vtanh.pop %v1642
        %v1648 = vmul.f32 %v1644, 0.5
        %v1649 = vmul.f32 %v1645, 0.5
        %v1650 = vmul.f32 %v1646, 0.5
        %v1651 = vmul.f32 %v1647, 0.5
        %v1652 = vadd.f32 %v1648, 0.5
        %v1653 = vadd.f32 %v1649, 0.5
        %v1654 = vadd.f32 %v1650, 0.5
        %v1655 = vadd.f32 %v1651, 0.5
        %1656 = vmatprep.subr.mxu0 %v1441
        %1657 = vmatpush1.msra.mxu0 %v1440
        %1658 = vmatprep.subr.mxu0 %v1439
        %1659 = vmatpush1.msra.mxu0 %v1438
        %1660 = vmatprep.subr.mxu0 %v1437
        %1661 = vmatpush1.msra.mxu0 %v1436
        %1662 = vmatprep.subr.mxu0 %v1435
        %1663 = vmatpush1.msra.mxu0 %v1434
        %1664 = vmatprep.subr.mxu0 %v1433
        %1665 = vmatpush1.msra.mxu0 %v1432
        %1666 = vmatprep.subr.mxu0 %v1431
        %1667 = vmatpush1.msra.mxu0 %v1430
        %1668 = vmatprep.subr.mxu0 %v1429
        %1669 = vmatpush1.msra.mxu0 %v1428
        %1670 = vmatprep.subr.mxu0 %v1427
        %1671 = vmatpush1.msra.mxu0 %v1426
        %1672 = vmatprep.subr.mxu0 %v1425
        %1673 = vmatpush1.msra.mxu0 %v1424
        %1674 = vmatprep.subr.mxu0 %v1423
        %1675 = vmatpush1.msra.mxu0 %v1422
        %1676 = vmatprep.subr.mxu0 %v1421
        %1677 = vmatpush1.msra.mxu0 %v1420
        %1678 = vmatprep.subr.mxu0 %v1419
        %1679 = vmatpush1.msra.mxu0 %v1418
        %1680 = vmatprep.subr.mxu0 %v1417
        %1681 = vmatpush1.msra.mxu0 %v1416
        %1682 = vmatprep.subr.mxu0 %v1415
        %1683 = vmatpush1.msra.mxu0 %v1414
        %1684 = vmatprep.subr.mxu0 %v1413
        %1685 = vmatpush1.msra.mxu0 %v1412
        %1686 = vmatprep.subr.mxu0 %v1411
        %1687 = vmatpush1.msra.mxu0 %v1410
        %1688 = vmatprep.subr.mxu0 %v1473
        %1689 = vmatpush2.msra.mxu0 %v1472
        %1690 = vmatprep.subr.mxu0 %v1471
        %1691 = vmatpush2.msra.mxu0 %v1470
        %1692 = vmatprep.subr.mxu0 %v1469
        %1693 = vmatpush2.msra.mxu0 %v1468
        %1694 = vmatprep.subr.mxu0 %v1467
        %1695 = vmatpush2.msra.mxu0 %v1466
        %1696 = vmatprep.subr.mxu0 %v1465
        %1697 = vmatpush2.msra.mxu0 %v1464
        %1698 = vmatprep.subr.mxu0 %v1463
        %1699 = vmatpush2.msra.mxu0 %v1462
        %1700 = vmatprep.subr.mxu0 %v1461
        %1701 = vmatpush2.msra.mxu0 %v1460
        %1702 = vmatprep.subr.mxu0 %v1459
        %1703 = vmatpush2.msra.mxu0 %v1458
        %1704 = vmatprep.subr.mxu0 %v1457
        %1705 = vmatpush2.msra.mxu0 %v1456
        %1706 = vmatprep.subr.mxu0 %v1455
        %1707 = vmatpush2.msra.mxu0 %v1454
        %1708 = vmatprep.subr.mxu0 %v1453
        %1709 = vmatpush2.msra.mxu0 %v1452
        %1710 = vmatprep.subr.mxu0 %v1451
        %1711 = vmatpush2.msra.mxu0 %v1450
        %1712 = vmatprep.subr.mxu0 %v1449
        %1713 = vmatpush2.msra.mxu0 %v1448
        %1714 = vmatprep.subr.mxu0 %v1447
        %1715 = vmatpush2.msra.mxu0 %v1446
        %1716 = vmatprep.subr.mxu0 %v1445
        %1717 = vmatpush2.msra.mxu0 %v1444
        %1718 = vmatprep.subr.mxu0 %v1443
        %1719 = vmatpush2.msra.mxu0 %v1442
        %1720 = vmatprep.mubr.f32.mxu0 %v1653
        %1721 = vmatmul.mubr.f32.gmra.mxu0 %v1652
        %v1722 = vpop.f32.mrf.mxu0
        %v1723 = vadd.f32 0.0, %v1722
        %v1724 = vpop.f32.mrf.mxu0
        %v1725 = vadd.f32 0.0, %v1724
        %1726 = vmatprep.mubr.f32.mxu0 %v1655
        %1727 = vmatmul.mubr.f32.gmra.mxu0 %v1654
        %v1728 = vpop.f32.mrf.mxu0
        %v1729 = vadd.f32 0.0, %v1728
        %v1730 = vpop.f32.mrf.mxu0
        %v1731 = vadd.f32 0.0, %v1730
        %1732 = vdwg.mxu0
        %v1733 = vmul.f32 %v1723, 0.11111111
        %v1734 = vmul.f32 %v1725, 0.11111111
        %v1735 = vmul.f32 %v1729, 0.11111111
        %v1736 = vmul.f32 %v1731, 0.11111111
        %v1737 = vsub.f32 %v1652, %v1733
        %v1738 = vsub.f32 %v1653, %v1734
        %v1739 = vsub.f32 %v1654, %v1735
        %v1740 = vsub.f32 %v1655, %v1736
        %s1741 = scalar_lea.vmem %s6, 32
        %v1742 = vld [vmem:[%s1741] sm:$0xff]
        %v1743 = vld [vmem:[%s1741 + $0x8] sm:$0xff]
        %s1744 = scalar_lea.vmem %s7, 32
        %v1745 = vld [vmem:[%s1744] sm:$0xff]
        %v1746 = vld [vmem:[%s1744 + $0x8] sm:$0xff]
        %1748 = vset.pattern.permute.xlu0 0
        %1749 = vperm.xlu0 %1748, %v1745
        %v1750 = vpop.permute.xlu0 %1749
        %1753 = vset.pattern.permute.xlu0 0
        %1754 = vperm.xlu0 %1753, %v1746
        %v1755 = vpop.permute.xlu0 %1754
        %v1758 = vsel %vm650, %v1742, 0
        %v1761 = vsel %vm650, %v1743, 0
        %1763 = vmatprep.subr.mxu0 0.0
        %1764 = vmatpush1.msra.mxu0 0.0
        %1765 = vmatprep.subr.mxu0 0.0
        %1766 = vmatpush1.msra.mxu0 0.0
        %1767 = vmatprep.subr.mxu0 0.0
        %1768 = vmatpush1.msra.mxu0 0.0
        %1769 = vmatprep.subr.mxu0 0.0
        %1770 = vmatpush1.msra.mxu0 0.0
        %1771 = vmatprep.subr.mxu0 0.0
        %1772 = vmatpush1.msra.mxu0 0.0
        %1773 = vmatprep.subr.mxu0 0.0
        %1774 = vmatpush1.msra.mxu0 0.0
        %1775 = vmatprep.subr.mxu0 0.0
        %1776 = vmatpush1.msra.mxu0 0.0
        %1777 = vmatprep.subr.mxu0 0.0
        %1778 = vmatpush1.msra.mxu0 0.0
        %1779 = vmatprep.subr.mxu0 0.0
        %1780 = vmatpush1.msra.mxu0 0.0
        %1781 = vmatprep.subr.mxu0 0.0
        %1782 = vmatpush1.msra.mxu0 0.0
        %1783 = vmatprep.subr.mxu0 0.0
        %1784 = vmatpush1.msra.mxu0 0.0
        %1785 = vmatprep.subr.mxu0 0.0
        %1786 = vmatpush1.msra.mxu0 0.0
        %1787 = vmatprep.subr.mxu0 0.0
        %1788 = vmatpush1.msra.mxu0 0.0
        %1789 = vmatprep.subr.mxu0 0.0
        %1790 = vmatpush1.msra.mxu0 0.0
        %1791 = vmatprep.subr.mxu0 %v1740
        %1792 = vmatpush1.msra.mxu0 %v1739
        %1793 = vmatprep.subr.mxu0 %v1738
        %1794 = vmatpush1.msra.mxu0 %v1737
        %1795 = vmatprep.subr.mxu0 0.0
        %1796 = vmatpush2.msra.mxu0 0.0
        %1797 = vmatprep.subr.mxu0 0.0
        %1798 = vmatpush2.msra.mxu0 0.0
        %1799 = vmatprep.subr.mxu0 0.0
        %1800 = vmatpush2.msra.mxu0 0.0
        %1801 = vmatprep.subr.mxu0 0.0
        %1802 = vmatpush2.msra.mxu0 0.0
        %1803 = vmatprep.subr.mxu0 0.0
        %1804 = vmatpush2.msra.mxu0 0.0
        %1805 = vmatprep.subr.mxu0 0.0
        %1806 = vmatpush2.msra.mxu0 0.0
        %1807 = vmatprep.subr.mxu0 0.0
        %1808 = vmatpush2.msra.mxu0 0.0
        %1809 = vmatprep.subr.mxu0 0.0
        %1810 = vmatpush2.msra.mxu0 0.0
        %1811 = vmatprep.subr.mxu0 0.0
        %1812 = vmatpush2.msra.mxu0 0.0
        %1813 = vmatprep.subr.mxu0 0.0
        %1814 = vmatpush2.msra.mxu0 0.0
        %1815 = vmatprep.subr.mxu0 0.0
        %1816 = vmatpush2.msra.mxu0 0.0
        %1817 = vmatprep.subr.mxu0 0.0
        %1818 = vmatpush2.msra.mxu0 0.0
        %1819 = vmatprep.subr.mxu0 0.0
        %1820 = vmatpush2.msra.mxu0 0.0
        %1821 = vmatprep.subr.mxu0 0.0
        %1822 = vmatpush2.msra.mxu0 0.0
        %1823 = vmatprep.subr.mxu0 0.0
        %1824 = vmatpush2.msra.mxu0 0.0
        %1825 = vmatprep.subr.mxu0 0.0
        %1826 = vmatpush2.msra.mxu0 0.0
        %1827 = vmatprep.mubr.f32.mxu0 0.0
        %1828 = vmatmul.mubr.f32.gmra.mxu0 %v1758
        %v1829 = vpop.f32.mrf.mxu0
        %v1830 = vadd.f32 %v1750, %v1829
        %v1831 = vpop.f32.mrf.mxu0
        %v1832 = vadd.f32 %v1750, %v1831
        %1833 = vmatprep.mubr.f32.mxu0 0.0
        %1834 = vmatmul.mubr.f32.gmra.mxu0 %v1761
        %v1835 = vpop.f32.mrf.mxu0
        %v1836 = vadd.f32 %v1755, %v1835
        %v1837 = vpop.f32.mrf.mxu0
        %v1838 = vadd.f32 %v1755, %v1837
        %1839 = vdwg.mxu0
        %v1840 = vtanh.pop %v1830
        %v1841 = vtanh.pop %v1832
        %v1842 = vtanh.pop %v1836
        %v1843 = vtanh.pop %v1838
        %v1844 = vmul.f32 %v1840, 0.5
        %v1845 = vmul.f32 %v1841, 0.5
        %v1846 = vmul.f32 %v1842, 0.5
        %v1847 = vmul.f32 %v1843, 0.5
        %v1848 = vadd.f32 %v1844, 0.5
        %v1849 = vadd.f32 %v1845, 0.5
        %v1850 = vadd.f32 %v1846, 0.5
        %v1851 = vadd.f32 %v1847, 0.5
        %v1852 = vadd.f32 %v1652, %v1848
        %v1853 = vadd.f32 %v1653, %v1849
        %v1854 = vadd.f32 %v1654, %v1850
        %v1855 = vadd.f32 %v1655, %v1851
        %1856 = vst [vmem:[#allocation2 + $0x60] sm:$0xff] %v1852
        %1857 = vst [vmem:[#allocation2 + $0x68] sm:$0xff] %v1853
        %1858 = vst [vmem:[#allocation2 + $0x70] sm:$0xff] %v1854
        %1859 = vst [vmem:[#allocation2 + $0x78] sm:$0xff] %v1855
        %v1860 = vld [vmem:[%s8] sm:$0xf]
        %v1861 = vld [vmem:[%s9] sm:$0xf]
        %v1862 = vld [vmem:[#allocation2] sm:$0xff]
        %v1863 = vld [vmem:[#allocation2 + $0x8] sm:$0xff]
        %v1864 = vld [vmem:[#allocation2 + $0x10] sm:$0xff]
        %v1865 = vld [vmem:[#allocation2 + $0x18] sm:$0xff]
        %v1866 = vld [vmem:[#allocation2 + $0x20] sm:$0xff]
        %v1867 = vld [vmem:[#allocation2 + $0x28] sm:$0xff]
        %v1868 = vld [vmem:[#allocation2 + $0x30] sm:$0xff]
        %v1869 = vld [vmem:[#allocation2 + $0x38] sm:$0xff]
        %v1870 = vld [vmem:[#allocation2 + $0x40] sm:$0xff]
        %v1871 = vld [vmem:[#allocation2 + $0x48] sm:$0xff]
        %v1872 = vld [vmem:[#allocation2 + $0x50] sm:$0xff]
        %v1873 = vld [vmem:[#allocation2 + $0x58] sm:$0xff]
        %v1874 = vld [vmem:[#allocation2 + $0x60] sm:$0xff]
        %v1875 = vld [vmem:[#allocation2 + $0x68] sm:$0xff]
        %v1876 = vld [vmem:[#allocation2 + $0x70] sm:$0xff]
        %v1877 = vld [vmem:[#allocation2 + $0x78] sm:$0xff]
        %1879 = vset.pattern.permute.xlu0 0
        %1880 = vperm.xlu0 %1879, %v1861
        %v1881 = vpop.permute.xlu0 %1880
        %vm1883 = vcmask 523264
        %v1885 = vsel %vm1883, %v1860, 0
        %1887 = vmatprep.subr.mxu0 0.0
        %1888 = vmatpush1.msra.mxu0 0.0
        %1889 = vmatprep.subr.mxu0 0.0
        %1890 = vmatpush1.msra.mxu0 0.0
        %1891 = vmatprep.subr.mxu0 0.0
        %1892 = vmatpush1.msra.mxu0 0.0
        %1893 = vmatprep.subr.mxu0 0.0
        %1894 = vmatpush1.msra.mxu0 0.0
        %1895 = vmatprep.subr.mxu0 0.0
        %1896 = vmatpush1.msra.mxu0 0.0
        %1897 = vmatprep.subr.mxu0 0.0
        %1898 = vmatpush1.msra.mxu0 0.0
        %1899 = vmatprep.subr.mxu0 0.0
        %1900 = vmatpush1.msra.mxu0 0.0
        %1901 = vmatprep.subr.mxu0 0.0
        %1902 = vmatpush1.msra.mxu0 0.0
        %1903 = vmatprep.subr.mxu0 %v1877
        %1904 = vmatpush1.msra.mxu0 %v1876
        %1905 = vmatprep.subr.mxu0 %v1875
        %1906 = vmatpush1.msra.mxu0 %v1874
        %1907 = vmatprep.subr.mxu0 %v1873
        %1908 = vmatpush1.msra.mxu0 %v1872
        %1909 = vmatprep.subr.mxu0 %v1871
        %1910 = vmatpush1.msra.mxu0 %v1870
        %1911 = vmatprep.subr.mxu0 %v1869
        %1912 = vmatpush1.msra.mxu0 %v1868
        %1913 = vmatprep.subr.mxu0 %v1867
        %1914 = vmatpush1.msra.mxu0 %v1866
        %1915 = vmatprep.subr.mxu0 %v1865
        %1916 = vmatpush1.msra.mxu0 %v1864
        %1917 = vmatprep.subr.mxu0 %v1863
        %1918 = vmatpush1.msra.mxu0 %v1862
        %1919 = vmatprep.subr.mxu0 0.0
        %1920 = vmatpush2.msra.mxu0 0.0
        %1921 = vmatprep.subr.mxu0 0.0
        %1922 = vmatpush2.msra.mxu0 0.0
        %1923 = vmatprep.subr.mxu0 0.0
        %1924 = vmatpush2.msra.mxu0 0.0
        %1925 = vmatprep.subr.mxu0 0.0
        %1926 = vmatpush2.msra.mxu0 0.0
        %1927 = vmatprep.subr.mxu0 0.0
        %1928 = vmatpush2.msra.mxu0 0.0
        %1929 = vmatprep.subr.mxu0 0.0
        %1930 = vmatpush2.msra.mxu0 0.0
        %1931 = vmatprep.subr.mxu0 0.0
        %1932 = vmatpush2.msra.mxu0 0.0
        %1933 = vmatprep.subr.mxu0 0.0
        %1934 = vmatpush2.msra.mxu0 0.0
        %1935 = vmatprep.subr.mxu0 0.0
        %1936 = vmatpush2.msra.mxu0 0.0
        %1937 = vmatprep.subr.mxu0 0.0
        %1938 = vmatpush2.msra.mxu0 0.0
        %1939 = vmatprep.subr.mxu0 0.0
        %1940 = vmatpush2.msra.mxu0 0.0
        %1941 = vmatprep.subr.mxu0 0.0
        %1942 = vmatpush2.msra.mxu0 0.0
        %1943 = vmatprep.subr.mxu0 0.0
        %1944 = vmatpush2.msra.mxu0 0.0
        %1945 = vmatprep.subr.mxu0 0.0
        %1946 = vmatpush2.msra.mxu0 0.0
        %1947 = vmatprep.subr.mxu0 0.0
        %1948 = vmatpush2.msra.mxu0 0.0
        %1949 = vmatprep.subr.mxu0 0.0
        %1950 = vmatpush2.msra.mxu0 0.0
        %1951 = vmatprep.mubr.f32.mxu0 0.0
        %1952 = vmatmul.mubr.f32.gmra.mxu0 %v1885
        %v1953 = vpop.f32.mrf.mxu0
        %v1954 = vadd.f32 %v1881, %v1953
        %v1955 = vpop.f32.mrf.mxu0
        %v1956 = vadd.f32 %v1881, %v1955
        %1957 = vdwg.mxu0
        %v1958 = vmax.f32 %v1954, 0.0
        %v1959 = vmax.f32 %v1956, 0.0
        %v1962 = vcombine.low %v1958, %v1959
        %1964 = vst [vmem:[%s367] sm:$0xff] %v1962
        %s1965 = sand.u32 %s248, 1
        %s1966 = scalar_lea.sflag [#allocation5], %s1965
        %s1967 = sand.u32 %s248, 1
        %s1968 = smul.addr %s1967, 8
        %s1969 = scalar_lea.vmem [#allocation6], %s1968
        // Predicated region
        $region65: #{tpu_custom_call.1} parent=59 // pred_check
          %p1970 = pneg %p258
        $region66: #{tpu_custom_call.1} parent=59 // pred_check_branch
          %1972 = sbr.rel (%p1970) target = $region68
        $region67: #{tpu_custom_call.1} parent=59 // pred_region
          %s1974 = ssub.s32 128, 128
          %1975 = vsyncadd %s1966, %s1974
          %s1976 = smul.addr %s25, 2
          %s1977 = smul.addr %s1976, 64
          %s1978 = scalar_lea.hbm %s10, %s1977
          %s1980 = sshll.u32 %s1969, 4
          %s1981 = int_to_ptr.vmem [resolvable:$true] %s1980
          %1983 = dma.vmem_to_hbm [thread:$0]  %s1981, 128, %s1978, %s1966
        $region68: #{tpu_custom_call.1} parent=59 // pred_fallthru
          _
      $region60: #{tpu_custom_call.1} parent=5 // pred_fallthru
        _
      %p1984 = scmp.le.s32.totalorder 2, %s20
      // Predicated region
      $region69: #{tpu_custom_call.1} parent=5 // pred_check
        %p1985 = pneg %p1984
      $region70: #{tpu_custom_call.1} parent=5 // pred_check_branch
        %1987 = sbr.rel (%p1985) target = $region72
      $region71: #{tpu_custom_call.1} parent=5 // pred_region
        %s1988 = ssub.s32 %s20, 2
        // Predicated region
        $region73: #{tpu_custom_call.1} parent=71 // pred_check
          %p1989 = pneg %p264
        $region74: #{tpu_custom_call.1} parent=71 // pred_check_branch
          %1991 = sbr.rel (%p1989) target = $region76
        $region75: #{tpu_custom_call.1} parent=71 // pred_region
          %s1992 = sand.u32 %s249, 1
          %s1993 = scalar_lea.sflag [#allocation5], %s1992
          %s1994 = sand.u32 %s249, 1
          %s1995 = smul.addr %s1994, 8
          %s1996 = scalar_lea.vmem [#allocation6], %s1995
          %1997 = dma.done %s1993, 128
        $region76: #{tpu_custom_call.1} parent=71 // pred_fallthru
          _
      $region72: #{tpu_custom_call.1} parent=5 // pred_fallthru
        _
    $region6: #{tpu_custom_call.1} parent=1 // loop_footer
      %s24 = sadd.s32 1, %s20
    $region7: #{tpu_custom_call.1} parent=1 // loop_footer_branch
      %19 = sbr.rel target = $region3
    $region8: #{tpu_custom_call.1} parent=1 // loop_exit
      _
    %1998 = vsyncpa [#allocation4], 1
    %s1999 = scalar_lea.sflag [#allocation4], 1
    %2000 = vsyncpa %s1999, 1
    %2001 = vsyncpa [#allocation5], 1
    %s2002 = scalar_lea.sflag [#allocation5], 1
    %2003 = vsyncpa %s2002, 1

</llo_original>
